<compile_context>
chip_gen: v7x
topology: tpu7x:2x2x1
jax: 0.10.0
libtpu: 0.0.40
codegen_flags: <defaults>
</compile_context>

<pallas_src>
import math

import jax
import jax.numpy as jnp
from jax import lax
from jax.experimental import pallas as pl
from jax.experimental.pallas import tpu as pltpu

# Small synthetic shapes consistent with the module.
B = 2            # batch
A = 4            # n_agents (sequence length for the self-attention)
F_IN = 16        # input_shape
H = 32           # rnn_hidden_dim
OUT = 32         # fc2 output width (nn.Linear(rnn_hidden_dim, 32))
BA = B * A       # flattened token axis
OUT_LANES = 128  # lane-dense output slab width: [tq | h | xx | pad]
_PAD = OUT_LANES - (OUT + 2 * H)   # 32

# Row layout of the packed weight slab. All offsets are multiples of 8, so the
# static in-kernel slices are sublane-tile-aligned zero-cost ref views.
_SLAB_ORDER = (
    ("wg", F_IN),                          # fc_gru               (F_IN, H)
    ("wo", H),                             # attention out-proj   (H, H)
    ("wa1", H),                            # att, x half of cat   (H, H)
    ("wa2", H),                            # att, attn half       (H, H)
    ("ihr", H), ("ihz", H), ("ihn", H),    # GRU weight_ih split per gate
    ("hhr", H), ("hhz", H), ("hhn", H),    # GRU weight_hh split per gate
    ("w2", H),                             # fc2                  (H, OUT)
)
_SLAB_OFF = {}
_off = 0
for _name, _rows in _SLAB_ORDER:
    _SLAB_OFF[_name] = (_off, _off + _rows)
    _off += _rows
W_SLAB_ROWS = _off   # 336

# Row layout of the packed (8, H) bias slab.
_B_BG, _B_BO, _B_BA, _B_BR, _B_BZ, _B_BIN, _B_BHN, _B_B2 = range(8)


def _tactic_selector_kernel(x_ref, h_ref, m_ref,
                            wqkv_ref, bqkv_ref, wslab_ref, bslab_ref,
                            out_ref):
    f32 = jnp.float32

    def w(name):
        lo, hi = _SLAB_OFF[name]
        return wslab_ref[lo:hi, :]            # static, 8-row aligned view

    b = bslab_ref[...]                        # (8, H)

    def bias(row):
        return b[row:row + 1, :]              # (1, H), broadcasts over rows

    x_in = x_ref[...]                         # (BA, F_IN)
    h_in = h_ref[...]                         # (BA, H)
    mask = m_ref[...]                         # (BA, BA), 1.0 == masked

    # x = relu(fc_gru(inputs))
    x = jnp.maximum(
        jnp.dot(x_in, w("wg"), preferred_element_type=f32) + bias(_B_BG), 0.0)

    # 1-head self-attention, fused q|k|v projection (single MXU push).
    qkv = jnp.dot(x, wqkv_ref[...], preferred_element_type=f32) + bqkv_ref[...]
    q, k, v = qkv[:, :H], qkv[:, H:2 * H], qkv[:, 2 * H:]

    scores = lax.dot_general(q, k, (((1,), (1,)), ((), ())),
                             preferred_element_type=f32) * (1.0 / math.sqrt(H))
    scores = jnp.where(mask > 0.5, -1e30, scores)   # finite: no NaN rows
    p = jnp.exp(scores - jnp.max(scores, axis=-1, keepdims=True))
    attn = p * pl.reciprocal(jnp.sum(p, axis=-1, keepdims=True), approx=True)
    ctx = jnp.dot(attn, v, preferred_element_type=f32)
    x_att = jnp.dot(ctx, w("wo"), preferred_element_type=f32) + bias(_B_BO)

    # xx = relu(att(cat(x, x_att)))  -- concat eliminated via split weights.
    xx = jnp.maximum(
        jnp.dot(x, w("wa1"), preferred_element_type=f32)
        + jnp.dot(x_att, w("wa2"), preferred_element_type=f32)
        + bias(_B_BA), 0.0)

    # GRUCell (PyTorch gate order r, z, n), computed gate-major.
    r = jax.nn.sigmoid(jnp.dot(xx, w("ihr"), preferred_element_type=f32)
                       + jnp.dot(h_in, w("hhr"), preferred_element_type=f32)
                       + bias(_B_BR))
    z = jax.nn.sigmoid(jnp.dot(xx, w("ihz"), preferred_element_type=f32)
                       + jnp.dot(h_in, w("hhz"), preferred_element_type=f32)
                       + bias(_B_BZ))
    n = jnp.tanh(jnp.dot(xx, w("ihn"), preferred_element_type=f32) + bias(_B_BIN)
                 + r * (jnp.dot(h_in, w("hhn"), preferred_element_type=f32)
                        + bias(_B_BHN)))
    h_new = (1.0 - z) * n + z * h_in

    # tactic_q = fc2(h)
    tq = jnp.dot(h_new, w("w2"), preferred_element_type=f32) + bias(_B_B2)

    # Single lane-dense (BA, 128) output slab: [tq | h | xx | 0-pad].
    out_ref[...] = jnp.concatenate(
        [tq, h_new, xx, jnp.zeros((BA, _PAD), f32)], axis=-1)


def _build_full_mask(drop_inputs):
    """Block-diagonal (B*A, B*A) mask; cross-batch entries are always masked."""
    tok_batch = jnp.arange(BA) // A
    full = (tok_batch[:, None] != tok_batch[None, :]).astype(jnp.float32)
    for b in range(B):
        full = full.at[b * A:(b + 1) * A, b * A:(b + 1) * A].set(drop_inputs[b])
    return full


def pack_params(params):
    """Pack the per-layer (in, out) weights into the kernel's 4 operand slabs."""
    (wg, bg, wq, bq, wk, bk, wv, bv, wo, bo,
     wa, ba, wih, bih, whh, bhh, w2, b2) = params
    w_qkv = jnp.concatenate([wq, wk, wv], axis=1)       # (H, 3H)
    b_qkv = jnp.concatenate([bq, bk, bv], axis=1)       # (1, 3H)
    pieces = dict(
        wg=wg, wo=wo, wa1=wa[:H], wa2=wa[H:],
        ihr=wih[:, :H], ihz=wih[:, H:2 * H], ihn=wih[:, 2 * H:],
        hhr=whh[:, :H], hhz=whh[:, H:2 * H], hhn=whh[:, 2 * H:],
        w2=w2)
    w_slab = jnp.concatenate([pieces[name] for name, _ in _SLAB_ORDER], axis=0)
    assert w_slab.shape == (W_SLAB_ROWS, H)
    b_slab = jnp.concatenate([
        bg, bo, ba,
        bih[:, :H] + bhh[:, :H],              # combined r-gate bias
        bih[:, H:2 * H] + bhh[:, H:2 * H],    # combined z-gate bias
        bih[:, 2 * H:], bhh[:, 2 * H:],       # n-gate biases stay separate
        b2], axis=0)                          # (8, H)
    return w_qkv, b_qkv, w_slab, b_slab


def tactic_selector_forward(inputs, hidden_state, drop_inputs, packed):
    """Returns (tactic_q, h, xx_) exactly like Tactic_Selector.forward."""
    w_qkv, b_qkv, w_slab, b_slab = packed
    x_flat = inputs.reshape(BA, F_IN)
    h_flat = hidden_state.reshape(BA, H)
    mask = _build_full_mask(drop_inputs)

    vmem = pl.BlockSpec(memory_space=pltpu.MemorySpace.VMEM)
    out = pl.pallas_call(
        _tactic_selector_kernel,
        out_shape=jax.ShapeDtypeStruct((BA, OUT_LANES), jnp.float32),
        in_specs=[vmem] * 7,
        out_specs=vmem,
        # NOTE: input_output_aliases (hidden -> h) would save an HBM round trip
        # in an RNN rollout loop; omitted here so the un-donated hidden_state
        # can still be used by the reference check in this standalone script.
    )(x_flat, h_flat, mask, w_qkv, b_qkv, w_slab, b_slab)

    tq = out[:, :OUT].reshape(B, A, OUT)
    h = out[:, OUT:OUT + H].reshape(B, A, H)
    xx = out[:, OUT + H:OUT + 2 * H]          # (B*A, H), as in torch forward
    return tq, h, xx


def init_params(key):
    """Deterministic synthetic parameters (weights pre-transposed to (in, out))."""
    def lin(k, din, dout):
        kw, kb = jax.random.split(k)
        w = jax.random.normal(kw, (din, dout), jnp.float32) * (1.0 / math.sqrt(din))
        b = jax.random.normal(kb, (1, dout), jnp.float32) * 0.01
        return w, b

    ks = jax.random.split(key, 9)
    wg, bg = lin(ks[0], F_IN, H)          # fc_gru
    wq, bq = lin(ks[1], H, H)             # MHA q in-proj
    wk, bk = lin(ks[2], H, H)             # MHA k in-proj
    wv, bv = lin(ks[3], H, H)             # MHA v in-proj
    wo, bo = lin(ks[4], H, H)             # MHA out-proj
    wa, ba = lin(ks[5], 2 * H, H)         # att linear
    wih, bih = lin(ks[6], H, 3 * H)       # GRUCell weight_ih / bias_ih
    whh, bhh = lin(ks[7], H, 3 * H)       # GRUCell weight_hh / bias_hh
    w2, b2 = lin(ks[8], H, OUT)           # fc2
    return (wg, bg, wq, bq, wk, bk, wv, bv, wo, bo,
            wa, ba, wih, bih, whh, bhh, w2, b2)


def reference_forward(inputs, hidden_state, drop_inputs, params):
    """Pure-JAX reference mirroring the PyTorch forward semantics."""
    (wg, bg, wq, bq, wk, bk, wv, bv, wo, bo,
     wa, ba, wih, bih, whh, bhh, w2, b2) = params
    x = jax.nn.relu(inputs @ wg + bg)
    q = x @ wq + bq
    k = x @ wk + bk
    v = x @ wv + bv
    scores = jnp.einsum('bad,bcd->bac', q, k) / math.sqrt(H)
    scores = jnp.where(drop_inputs > 0.5, -jnp.inf, scores)
    attn = jax.nn.softmax(scores, axis=-1)
    x_att = jnp.einsum('bac,bcd->bad', attn, v) @ wo + bo
    cat = jnp.concatenate([x, x_att], axis=-1)
    xx = jax.nn.relu(cat @ wa + ba)
    gi = xx @ wih + bih
    gh = hidden_state @ whh + bhh
    i_r, i_z, i_n = jnp.split(gi, 3, axis=-1)
    h_r, h_z, h_n = jnp.split(gh, 3, axis=-1)
    r = jax.nn.sigmoid(i_r + h_r)
    z = jax.nn.sigmoid(i_z + h_z)
    n = jnp.tanh(i_n + r * h_n)
    h_new = (1.0 - z) * n + z * hidden_state
    tq = h_new @ w2 + b2
    return tq, h_new, xx.reshape(-1, H)


if __name__ == "__main__":
    key = jax.random.PRNGKey(0)
    k_in, k_h, k_m, k_p = jax.random.split(key, 4)

    inputs = jax.random.normal(k_in, (B, A, F_IN), jnp.float32)
    hidden = jax.random.normal(k_h, (B, A, H), jnp.float32)
    # drop_inputs: 1.0 == masked (torch bool True); keep diagonal unmasked so
    # no row is fully masked (same as torch usage).
    mask_bool = jax.random.uniform(k_m, (B, A, A)) < 0.3
    mask_bool = jnp.where(jnp.eye(A, dtype=bool)[None], False, mask_bool)
    drop_inputs = mask_bool.astype(jnp.float32)

    params = init_params(k_p)
    packed = pack_params(params)

    tq, h, xx = tactic_selector_forward(inputs, hidden, drop_inputs, packed)
    jax.block_until_ready((tq, h, xx))

    tq_r, h_r, xx_r = reference_forward(inputs, hidden, drop_inputs, params)
    assert tq.shape == (B, A, OUT) and h.shape == (B, A, H) and xx.shape == (BA, H)
    # Slightly looser tolerance: EUP approximate reciprocal in the softmax.
    assert jnp.allclose(tq, tq_r, atol=2e-3), "tactic_q mismatch"
    assert jnp.allclose(h, h_r, atol=2e-3), "hidden mismatch"
    assert jnp.allclose(xx, xx_r, atol=2e-3), "xx_ mismatch"

    # TODO(synk): select_tactic (gumbel-softmax / epsilon-greedy sampling,
    # commander/linear/tactic-embedding heads) is not part of forward() and is
    # intentionally not implemented here.
    print("KERNEL_OK")
</pallas_src>

<mosaic_0001>
module attributes {stable_mosaic.version = 11 : i64} {
  func.func @_tactic_selector_kernel(%arg0: memref<8x16xf32, #tpu.memory_space<vmem>>, %arg1: memref<8x32xf32, #tpu.memory_space<vmem>>, %arg2: memref<8x8xf32, #tpu.memory_space<vmem>>, %arg3: memref<32x96xf32, #tpu.memory_space<vmem>>, %arg4: memref<1x96xf32, #tpu.memory_space<vmem>>, %arg5: memref<336x32xf32, #tpu.memory_space<vmem>>, %arg6: memref<8x32xf32, #tpu.memory_space<vmem>>, %arg7: memref<8x128xf32, #tpu.memory_space<vmem>>) attributes {dimension_semantics = [], scalar_prefetch = 0 : i64, scratch_operands = 0 : i64, tpu.core_type = #tpu.core_type<tc>} {
    %c0 = arith.constant 0 : index
    %c0_0 = arith.constant 0 : index
    %0 = vector.load %arg6[%c0, %c0_0] : memref<8x32xf32, #tpu.memory_space<vmem>>, vector<8x32xf32>
    %c0_1 = arith.constant 0 : index
    %c0_2 = arith.constant 0 : index
    %1 = vector.load %arg0[%c0_1, %c0_2] : memref<8x16xf32, #tpu.memory_space<vmem>>, vector<8x16xf32>
    %c0_3 = arith.constant 0 : index
    %c0_4 = arith.constant 0 : index
    %2 = vector.load %arg1[%c0_3, %c0_4] : memref<8x32xf32, #tpu.memory_space<vmem>>, vector<8x32xf32>
    %c0_5 = arith.constant 0 : index
    %c0_6 = arith.constant 0 : index
    %3 = vector.load %arg2[%c0_5, %c0_6] : memref<8x8xf32, #tpu.memory_space<vmem>>, vector<8x8xf32>
    %c0_7 = arith.constant 0 : index
    %c0_8 = arith.constant 0 : index
    %4 = vector.load %arg5[%c0_7, %c0_8] : memref<336x32xf32, #tpu.memory_space<vmem>>, vector<16x32xf32>
    %cst = arith.constant dense<0.000000e+00> : vector<8x32xf32>
    %5 = tpu.matmul %1, %4, %cst {dimension_numbers = #tpu.dot_dimension_numbers<[1], [0], [0], [1], [0, 0, 1, 1], [], []>} : vector<8x16xf32>, vector<16x32xf32>, vector<8x32xf32> -> vector<8x32xf32>
    %6 = vector.extract_strided_slice %0 {offsets = [0, 0], sizes = [1, 32], strides = [1, 1]} : vector<8x32xf32> to vector<1x32xf32>
    %7 = vector.broadcast %6 : vector<1x32xf32> to vector<8x32xf32>
    %8 = arith.addf %5, %7 : vector<8x32xf32>
    %cst_9 = arith.constant 0.000000e+00 : f32
    %9 = vector.broadcast %cst_9 : f32 to vector<8x32xf32>
    %10 = arith.maximumf %8, %9 : vector<8x32xf32>
    %c0_10 = arith.constant 0 : index
    %c0_11 = arith.constant 0 : index
    %11 = vector.load %arg3[%c0_10, %c0_11] : memref<32x96xf32, #tpu.memory_space<vmem>>, vector<32x96xf32>
    %cst_12 = arith.constant dense<0.000000e+00> : vector<8x96xf32>
    %12 = tpu.matmul %10, %11, %cst_12 {dimension_numbers = #tpu.dot_dimension_numbers<[1], [0], [0], [1], [0, 0, 1, 1], [], []>} : vector<8x32xf32>, vector<32x96xf32>, vector<8x96xf32> -> vector<8x96xf32>
    %c0_13 = arith.constant 0 : index
    %c0_14 = arith.constant 0 : index
    %13 = vector.load %arg4[%c0_13, %c0_14] : memref<1x96xf32, #tpu.memory_space<vmem>>, vector<1x96xf32>
    %14 = vector.broadcast %13 : vector<1x96xf32> to vector<8x96xf32>
    %15 = arith.addf %12, %14 : vector<8x96xf32>
    %16 = vector.extract_strided_slice %15 {offsets = [0, 0], sizes = [8, 32], strides = [1, 1]} : vector<8x96xf32> to vector<8x32xf32>
    %17 = vector.extract_strided_slice %15 {offsets = [0, 32], sizes = [8, 32], strides = [1, 1]} : vector<8x96xf32> to vector<8x32xf32>
    %18 = vector.extract_strided_slice %15 {offsets = [0, 64], sizes = [8, 32], strides = [1, 1]} : vector<8x96xf32> to vector<8x32xf32>
    %cst_15 = arith.constant dense<0.000000e+00> : vector<8x8xf32>
    %19 = tpu.matmul %16, %17, %cst_15 {dimension_numbers = #tpu.dot_dimension_numbers<[1], [1], [0], [0], [0, 0, 1, 0], [], []>} : vector<8x32xf32>, vector<8x32xf32>, vector<8x8xf32> -> vector<8x8xf32>
    %cst_16 = arith.constant 0.176776692 : f32
    %20 = vector.broadcast %cst_16 : f32 to vector<8x8xf32>
    %21 = arith.mulf %19, %20 : vector<8x8xf32>
    %cst_17 = arith.constant 5.000000e-01 : f32
    %22 = vector.broadcast %cst_17 : f32 to vector<8x8xf32>
    %23 = arith.cmpf ogt, %3, %22 : vector<8x8xf32>
    %cst_18 = arith.constant -1.000000e+30 : f32
    %24 = vector.broadcast %cst_18 : f32 to vector<8x8xf32>
    %25 = arith.select %23, %24, %21 : vector<8x8xi1>, vector<8x8xf32>
    %cst_19 = arith.constant dense<0xFF800000> : vector<8xf32>
    %26 = vector.multi_reduction <maximumf>, %25, %cst_19 [1] : vector<8x8xf32> to vector<8xf32>
    %27 = vector.shape_cast %26 : vector<8xf32> to vector<8x1xf32>
    %28 = vector.broadcast %27 : vector<8x1xf32> to vector<8x8xf32>
    %29 = arith.subf %25, %28 : vector<8x8xf32>
    %30 = math.exp %29 : vector<8x8xf32>
    %cst_20 = arith.constant dense<0.000000e+00> : vector<8xf32>
    %31 = vector.multi_reduction <add>, %30, %cst_20 [1] : vector<8x8xf32> to vector<8xf32>
    %32 = vector.shape_cast %31 : vector<8xf32> to vector<8x1xf32>
    %33 = tpu.reciprocal %32 {approx = true} : vector<8x1xf32> -> vector<8x1xf32>
    %34 = vector.broadcast %33 : vector<8x1xf32> to vector<8x8xf32>
    %35 = arith.mulf %30, %34 : vector<8x8xf32>
    %cst_21 = arith.constant dense<0.000000e+00> : vector<8x32xf32>
    %36 = tpu.matmul %35, %18, %cst_21 {dimension_numbers = #tpu.dot_dimension_numbers<[1], [0], [0], [1], [0, 0, 1, 1], [], []>} : vector<8x8xf32>, vector<8x32xf32>, vector<8x32xf32> -> vector<8x32xf32>
    %c16 = arith.constant 16 : index
    %c0_22 = arith.constant 0 : index
    %37 = vector.load %arg5[%c16, %c0_22] : memref<336x32xf32, #tpu.memory_space<vmem>>, vector<32x32xf32>
    %cst_23 = arith.constant dense<0.000000e+00> : vector<8x32xf32>
    %38 = tpu.matmul %36, %37, %cst_23 {dimension_numbers = #tpu.dot_dimension_numbers<[1], [0], [0], [1], [0, 0, 1, 1], [], []>} : vector<8x32xf32>, vector<32x32xf32>, vector<8x32xf32> -> vector<8x32xf32>
    %39 = vector.extract_strided_slice %0 {offsets = [1, 0], sizes = [1, 32], strides = [1, 1]} : vector<8x32xf32> to vector<1x32xf32>
    %40 = vector.broadcast %39 : vector<1x32xf32> to vector<8x32xf32>
    %41 = arith.addf %38, %40 : vector<8x32xf32>
    %c48 = arith.constant 48 : index
    %c0_24 = arith.constant 0 : index
    %42 = vector.load %arg5[%c48, %c0_24] : memref<336x32xf32, #tpu.memory_space<vmem>>, vector<32x32xf32>
    %cst_25 = arith.constant dense<0.000000e+00> : vector<8x32xf32>
    %43 = tpu.matmul %10, %42, %cst_25 {dimension_numbers = #tpu.dot_dimension_numbers<[1], [0], [0], [1], [0, 0, 1, 1], [], []>} : vector<8x32xf32>, vector<32x32xf32>, vector<8x32xf32> -> vector<8x32xf32>
    %c80 = arith.constant 80 : index
    %c0_26 = arith.constant 0 : index
    %44 = vector.load %arg5[%c80, %c0_26] : memref<336x32xf32, #tpu.memory_space<vmem>>, vector<32x32xf32>
    %cst_27 = arith.constant dense<0.000000e+00> : vector<8x32xf32>
    %45 = tpu.matmul %41, %44, %cst_27 {dimension_numbers = #tpu.dot_dimension_numbers<[1], [0], [0], [1], [0, 0, 1, 1], [], []>} : vector<8x32xf32>, vector<32x32xf32>, vector<8x32xf32> -> vector<8x32xf32>
    %46 = arith.addf %43, %45 : vector<8x32xf32>
    %47 = vector.extract_strided_slice %0 {offsets = [2, 0], sizes = [1, 32], strides = [1, 1]} : vector<8x32xf32> to vector<1x32xf32>
    %48 = vector.broadcast %47 : vector<1x32xf32> to vector<8x32xf32>
    %49 = arith.addf %46, %48 : vector<8x32xf32>
    %cst_28 = arith.constant 0.000000e+00 : f32
    %50 = vector.broadcast %cst_28 : f32 to vector<8x32xf32>
    %51 = arith.maximumf %49, %50 : vector<8x32xf32>
    %c112 = arith.constant 112 : index
    %c0_29 = arith.constant 0 : index
    %52 = vector.load %arg5[%c112, %c0_29] : memref<336x32xf32, #tpu.memory_space<vmem>>, vector<32x32xf32>
    %cst_30 = arith.constant dense<0.000000e+00> : vector<8x32xf32>
    %53 = tpu.matmul %51, %52, %cst_30 {dimension_numbers = #tpu.dot_dimension_numbers<[1], [0], [0], [1], [0, 0, 1, 1], [], []>} : vector<8x32xf32>, vector<32x32xf32>, vector<8x32xf32> -> vector<8x32xf32>
    %c208 = arith.constant 208 : index
    %c0_31 = arith.constant 0 : index
    %54 = vector.load %arg5[%c208, %c0_31] : memref<336x32xf32, #tpu.memory_space<vmem>>, vector<32x32xf32>
    %cst_32 = arith.constant dense<0.000000e+00> : vector<8x32xf32>
    %55 = tpu.matmul %2, %54, %cst_32 {dimension_numbers = #tpu.dot_dimension_numbers<[1], [0], [0], [1], [0, 0, 1, 1], [], []>} : vector<8x32xf32>, vector<32x32xf32>, vector<8x32xf32> -> vector<8x32xf32>
    %56 = arith.addf %53, %55 : vector<8x32xf32>
    %57 = vector.extract_strided_slice %0 {offsets = [3, 0], sizes = [1, 32], strides = [1, 1]} : vector<8x32xf32> to vector<1x32xf32>
    %58 = vector.broadcast %57 : vector<1x32xf32> to vector<8x32xf32>
    %59 = arith.addf %56, %58 : vector<8x32xf32>
    %60 = arith.negf %59 : vector<8x32xf32>
    %61 = math.exp %60 : vector<8x32xf32>
    %cst_33 = arith.constant 1.000000e+00 : f32
    %62 = vector.broadcast %cst_33 : f32 to vector<8x32xf32>
    %63 = arith.addf %62, %61 : vector<8x32xf32>
    %64 = arith.divf %62, %63 : vector<8x32xf32>
    %c144 = arith.constant 144 : index
    %c0_34 = arith.constant 0 : index
    %65 = vector.load %arg5[%c144, %c0_34] : memref<336x32xf32, #tpu.memory_space<vmem>>, vector<32x32xf32>
    %cst_35 = arith.constant dense<0.000000e+00> : vector<8x32xf32>
    %66 = tpu.matmul %51, %65, %cst_35 {dimension_numbers = #tpu.dot_dimension_numbers<[1], [0], [0], [1], [0, 0, 1, 1], [], []>} : vector<8x32xf32>, vector<32x32xf32>, vector<8x32xf32> -> vector<8x32xf32>
    %c240 = arith.constant 240 : index
    %c0_36 = arith.constant 0 : index
    %67 = vector.load %arg5[%c240, %c0_36] : memref<336x32xf32, #tpu.memory_space<vmem>>, vector<32x32xf32>
    %cst_37 = arith.constant dense<0.000000e+00> : vector<8x32xf32>
    %68 = tpu.matmul %2, %67, %cst_37 {dimension_numbers = #tpu.dot_dimension_numbers<[1], [0], [0], [1], [0, 0, 1, 1], [], []>} : vector<8x32xf32>, vector<32x32xf32>, vector<8x32xf32> -> vector<8x32xf32>
    %69 = arith.addf %66, %68 : vector<8x32xf32>
    %70 = vector.extract_strided_slice %0 {offsets = [4, 0], sizes = [1, 32], strides = [1, 1]} : vector<8x32xf32> to vector<1x32xf32>
    %71 = vector.broadcast %70 : vector<1x32xf32> to vector<8x32xf32>
    %72 = arith.addf %69, %71 : vector<8x32xf32>
    %73 = arith.negf %72 : vector<8x32xf32>
    %74 = math.exp %73 : vector<8x32xf32>
    %cst_38 = arith.constant 1.000000e+00 : f32
    %75 = vector.broadcast %cst_38 : f32 to vector<8x32xf32>
    %76 = arith.addf %75, %74 : vector<8x32xf32>
    %77 = arith.divf %75, %76 : vector<8x32xf32>
    %c176 = arith.constant 176 : index
    %c0_39 = arith.constant 0 : index
    %78 = vector.load %arg5[%c176, %c0_39] : memref<336x32xf32, #tpu.memory_space<vmem>>, vector<32x32xf32>
    %cst_40 = arith.constant dense<0.000000e+00> : vector<8x32xf32>
    %79 = tpu.matmul %51, %78, %cst_40 {dimension_numbers = #tpu.dot_dimension_numbers<[1], [0], [0], [1], [0, 0, 1, 1], [], []>} : vector<8x32xf32>, vector<32x32xf32>, vector<8x32xf32> -> vector<8x32xf32>
    %80 = vector.extract_strided_slice %0 {offsets = [5, 0], sizes = [1, 32], strides = [1, 1]} : vector<8x32xf32> to vector<1x32xf32>
    %81 = vector.broadcast %80 : vector<1x32xf32> to vector<8x32xf32>
    %82 = arith.addf %79, %81 : vector<8x32xf32>
    %c272 = arith.constant 272 : index
    %c0_41 = arith.constant 0 : index
    %83 = vector.load %arg5[%c272, %c0_41] : memref<336x32xf32, #tpu.memory_space<vmem>>, vector<32x32xf32>
    %cst_42 = arith.constant dense<0.000000e+00> : vector<8x32xf32>
    %84 = tpu.matmul %2, %83, %cst_42 {dimension_numbers = #tpu.dot_dimension_numbers<[1], [0], [0], [1], [0, 0, 1, 1], [], []>} : vector<8x32xf32>, vector<32x32xf32>, vector<8x32xf32> -> vector<8x32xf32>
    %85 = vector.extract_strided_slice %0 {offsets = [6, 0], sizes = [1, 32], strides = [1, 1]} : vector<8x32xf32> to vector<1x32xf32>
    %86 = vector.broadcast %85 : vector<1x32xf32> to vector<8x32xf32>
    %87 = arith.addf %84, %86 : vector<8x32xf32>
    %88 = arith.mulf %64, %87 : vector<8x32xf32>
    %89 = arith.addf %82, %88 : vector<8x32xf32>
    %90 = math.tanh %89 : vector<8x32xf32>
    %cst_43 = arith.constant 1.000000e+00 : f32
    %91 = vector.broadcast %cst_43 : f32 to vector<8x32xf32>
    %92 = arith.subf %91, %77 : vector<8x32xf32>
    %93 = arith.mulf %92, %90 : vector<8x32xf32>
    %94 = arith.mulf %77, %2 : vector<8x32xf32>
    %95 = arith.addf %93, %94 : vector<8x32xf32>
    %c304 = arith.constant 304 : index
    %c0_44 = arith.constant 0 : index
    %96 = vector.load %arg5[%c304, %c0_44] : memref<336x32xf32, #tpu.memory_space<vmem>>, vector<32x32xf32>
    %cst_45 = arith.constant dense<0.000000e+00> : vector<8x32xf32>
    %97 = tpu.matmul %95, %96, %cst_45 {dimension_numbers = #tpu.dot_dimension_numbers<[1], [0], [0], [1], [0, 0, 1, 1], [], []>} : vector<8x32xf32>, vector<32x32xf32>, vector<8x32xf32> -> vector<8x32xf32>
    %98 = vector.extract_strided_slice %0 {offsets = [7, 0], sizes = [1, 32], strides = [1, 1]} : vector<8x32xf32> to vector<1x32xf32>
    %99 = vector.broadcast %98 : vector<1x32xf32> to vector<8x32xf32>
    %100 = arith.addf %97, %99 : vector<8x32xf32>
    %cst_46 = arith.constant 0.000000e+00 : f32
    %101 = vector.broadcast %cst_46 : f32 to vector<8x32xf32>
    %102 = tpu.concatenate %100, %95, %51, %101 in 1 : vector<8x32xf32>, vector<8x32xf32>, vector<8x32xf32>, vector<8x32xf32> -> vector<8x128xf32>
    %c0_47 = arith.constant 0 : index
    %c0_48 = arith.constant 0 : index
    %103 = vector.load %arg7[%c0_47, %c0_48] : memref<8x128xf32, #tpu.memory_space<vmem>>, vector<8x128xf32>
    tpu.vector_store %arg7[%c0_47, %c0_48], %102 {strides = array<i32>} : memref<8x128xf32, #tpu.memory_space<vmem>>, vector<8x128xf32>,
    return
  }
}

</mosaic_0001>

<llo_original>
// kernel: tpu_custom_call.1
$region0: #{tpu_custom_call.1}
  #allocation0 [shape = 'u32[]', space=smem, size = 0x4, offset = 0x4, fixed_abs, tag = 'smem constant byte address 0x4 - core index']
  #allocation1 [shape = 'u32[144,128]{1,0:T(1,128)}', space=vmem, size = 0x12000, scoped, tag = 'internal scratch']
  %s0 = inlined_call_operand.vmem [shape: f32[8,16], index: 0, kind: input, shape index: {}]
  %s1 = inlined_call_operand.vmem [shape: f32[8,32], index: 1, kind: input, shape index: {}]
  %s2 = inlined_call_operand.vmem [shape: f32[8,8], index: 2, kind: input, shape index: {}]
  %s3 = inlined_call_operand.vmem [shape: f32[32,96], index: 3, kind: input, shape index: {}]
  %s4 = inlined_call_operand.vmem [shape: f32[1,96], index: 4, kind: input, shape index: {}]
  %s5 = inlined_call_operand.vmem [shape: f32[336,32], index: 5, kind: input, shape index: {}]
  %s6 = inlined_call_operand.vmem [shape: f32[8,32], index: 6, kind: input, shape index: {}]
  %s7 = inlined_call_operand.hbm [shape: f32[8,128], index: 7, kind: output, shape index: {}]
  %s8 = sld [smem:[#allocation0]]
  $region38: #{tpu_custom_call.1} parent=0
    _
  %s10 = ssub.s32 1, %s8
  %s11 = scalar_select 0, %s10, %s8
  $region1: #{tpu_custom_call.1} parent=0
    #allocation2 [shape = 'u8[4096]{0}', space=vmem, size = 0x1000, scoped, tag = 'output window, operand 0, single buffered']
    #allocation3 [shape = 's32[1]{0}', space=sflag, size = 0x4, scoped, tag = 'scoped memory for tpu_custom_call.1']
    %12 = vsyncpa [#allocation3], 0
    // Predicated region
    $region2: #{tpu_custom_call.1} parent=1 // pred_check
      _
    $region3: #{tpu_custom_call.1} parent=1 // pred_check_branch
      %14 = sbr.rel (0) target = $region5
    $region4: #{tpu_custom_call.1} parent=1 // pred_region
      _
    $region5: #{tpu_custom_call.1} parent=1 // pred_fallthru
      _
    // Predicated region
    $region6: #{tpu_custom_call.1} parent=1 // pred_check
      _
    $region7: #{tpu_custom_call.1} parent=1 // pred_check_branch
      %16 = sbr.rel (0) target = $region9
    $region8: #{tpu_custom_call.1} parent=1 // pred_region
      _
    $region9: #{tpu_custom_call.1} parent=1 // pred_fallthru
      _
    // Predicated region
    $region10: #{tpu_custom_call.1} parent=1 // pred_check
      _
    $region11: #{tpu_custom_call.1} parent=1 // pred_check_branch
      %18 = sbr.rel (0) target = $region13
    $region12: #{tpu_custom_call.1} parent=1 // pred_region
      _
    $region13: #{tpu_custom_call.1} parent=1 // pred_fallthru
      _
    // Predicated region
    $region14: #{tpu_custom_call.1} parent=1 // pred_check
      _
    $region15: #{tpu_custom_call.1} parent=1 // pred_check_branch
      %20 = sbr.rel (0) target = $region17
    $region16: #{tpu_custom_call.1} parent=1 // pred_region
      _
    $region17: #{tpu_custom_call.1} parent=1 // pred_fallthru
      _
    // Predicated region
    $region18: #{tpu_custom_call.1} parent=1 // pred_check
      _
    $region19: #{tpu_custom_call.1} parent=1 // pred_check_branch
      %22 = sbr.rel (0) target = $region21
    $region20: #{tpu_custom_call.1} parent=1 // pred_region
      _
    $region21: #{tpu_custom_call.1} parent=1 // pred_fallthru
      _
    // Predicated region
    $region22: #{tpu_custom_call.1} parent=1 // pred_check
      _
    $region23: #{tpu_custom_call.1} parent=1 // pred_check_branch
      %24 = sbr.rel (0) target = $region25
    $region24: #{tpu_custom_call.1} parent=1 // pred_region
      _
    $region25: #{tpu_custom_call.1} parent=1 // pred_fallthru
      _
    // Predicated region
    $region26: #{tpu_custom_call.1} parent=1 // pred_check
      _
    $region27: #{tpu_custom_call.1} parent=1 // pred_check_branch
      %26 = sbr.rel (0) target = $region29
    $region28: #{tpu_custom_call.1} parent=1 // pred_region
      _
    $region29: #{tpu_custom_call.1} parent=1 // pred_fallthru
      _
    %v27 = vld [vmem:[%s6] sm:$0xff]
    %v28 = vld [vmem:[%s0] sm:$0xff]
    %v29 = vld [vmem:[%s1] sm:$0xff]
    %v30 = vld [vmem:[%s2] sm:$0xff]
    %v31 = vld [vmem:[%s5] sm:$0xff]
    %v32 = vld [vmem:[%s5 + $0x8] sm:$0xff]
    %v33 = vlaneseq
    %v34 = vshrl.u32 %v33, 7
    %v35 = vsub.s32 0, %v34
    %v36 = vrot.slane %v27, %v35
    %vm37 = vcmask 130048
    %v39 = vsel %vm37, %v28, 0
    %41 = vmatprep.subr.mxu0 0.0
    %42 = vmatpush1.msra.mxu0 %v31
    %43 = vmatprep.subr.mxu0 0.0
    %44 = vmatpush1.msra.mxu0 %v32
    %45 = vmatprep.subr.mxu0 0.0
    %46 = vmatpush1.msra.mxu0 0.0
    %47 = vmatprep.subr.mxu0 0.0
    %48 = vmatpush1.msra.mxu0 0.0
    %49 = vmatprep.subr.mxu0 0.0
    %50 = vmatpush1.msra.mxu0 0.0
    %51 = vmatprep.subr.mxu0 0.0
    %52 = vmatpush1.msra.mxu0 0.0
    %53 = vmatprep.subr.mxu0 0.0
    %54 = vmatpush1.msra.mxu0 0.0
    %55 = vmatprep.subr.mxu0 0.0
    %56 = vmatpush1.msra.mxu0 0.0
    %57 = vmatprep.subr.mxu0 0.0
    %58 = vmatpush1.msra.mxu0 0.0
    %59 = vmatprep.subr.mxu0 0.0
    %60 = vmatpush1.msra.mxu0 0.0
    %61 = vmatprep.subr.mxu0 0.0
    %62 = vmatpush1.msra.mxu0 0.0
    %63 = vmatprep.subr.mxu0 0.0
    %64 = vmatpush1.msra.mxu0 0.0
    %65 = vmatprep.subr.mxu0 0.0
    %66 = vmatpush1.msra.mxu0 0.0
    %67 = vmatprep.subr.mxu0 0.0
    %68 = vmatpush1.msra.mxu0 0.0
    %69 = vmatprep.subr.mxu0 0.0
    %70 = vmatpush1.msra.mxu0 0.0
    %71 = vmatprep.subr.mxu0 0.0
    %72 = vmatpush1.msra.mxu0 0.0
    %73 = vmatprep.subr.mxu0 0.0
    %74 = vmatpush1.msra.mxu0 0.0
    %75 = vmatprep.subr.mxu0 0.0
    %76 = vmatpush1.msra.mxu0 0.0
    %77 = vmatprep.subr.mxu0 0.0
    %78 = vmatpush1.msra.mxu0 0.0
    %79 = vmatprep.subr.mxu0 0.0
    %80 = vmatpush1.msra.mxu0 0.0
    %81 = vmatprep.subr.mxu0 0.0
    %82 = vmatpush1.msra.mxu0 0.0
    %83 = vmatprep.subr.mxu0 0.0
    %84 = vmatpush1.msra.mxu0 0.0
    %85 = vmatprep.subr.mxu0 0.0
    %86 = vmatpush1.msra.mxu0 0.0
    %87 = vmatprep.subr.mxu0 0.0
    %88 = vmatpush1.msra.mxu0 0.0
    %89 = vmatprep.subr.mxu0 0.0
    %90 = vmatpush1.msra.mxu0 0.0
    %91 = vmatprep.subr.mxu0 0.0
    %92 = vmatpush1.msra.mxu0 0.0
    %93 = vmatprep.subr.mxu0 0.0
    %94 = vmatpush1.msra.mxu0 0.0
    %95 = vmatprep.subr.mxu0 0.0
    %96 = vmatpush1.msra.mxu0 0.0
    %97 = vmatprep.subr.mxu0 0.0
    %98 = vmatpush1.msra.mxu0 0.0
    %99 = vmatprep.subr.mxu0 0.0
    %100 = vmatpush1.msra.mxu0 0.0
    %101 = vmatprep.subr.mxu0 0.0
    %102 = vmatpush1.msra.mxu0 0.0
    %103 = vmatprep.subr.mxu0 0.0
    %104 = vmatpush1.msra.mxu0 0.0
    %105 = vmatprep.mubr.f32.mxu0 0.0
    %106 = vmatmul.mubr.f32.gmra.mrb[0].mxu0 %v39
    %v107 = vpop.f32.mrb[0].mxu0
    %v108 = vadd.f32 %v36, %v107
    %v109 = vpop.f32.mrb[0].mxu0
    %110 = vdwg.mxu0
    %v111 = vmax.f32 %v108, 0.0
    %v112 = vld [vmem:[%s3] sm:$0xff]
    %v113 = vld [vmem:[%s3 + $0x8] sm:$0xff]
    %v114 = vld [vmem:[%s3 + $0x10] sm:$0xff]
    %v115 = vld [vmem:[%s3 + $0x18] sm:$0xff]
    %v116 = vld [vmem:[%s4] sm:$0x1]
    %v118 = vlaneseq
    %v119 = vshrl.u32 %v118, 7
    %v120 = vsub.s32 0, %v119
    %v121 = vrot.slane %v116, %v120
    %vm123 = vcmask 261120
    %v125 = vsel %vm123, %v111, 0
    %127 = vmatprep.subr.mxu0 0.0
    %128 = vmatpush1.msra.mxu0 %v112
    %129 = vmatprep.subr.mxu0 0.0
    %130 = vmatpush1.msra.mxu0 %v113
    %131 = vmatprep.subr.mxu0 0.0
    %132 = vmatpush1.msra.mxu0 %v114
    %133 = vmatprep.subr.mxu0 0.0
    %134 = vmatpush1.msra.mxu0 %v115
    %135 = vmatprep.subr.mxu0 0.0
    %136 = vmatpush1.msra.mxu0 0.0
    %137 = vmatprep.subr.mxu0 0.0
    %138 = vmatpush1.msra.mxu0 0.0
    %139 = vmatprep.subr.mxu0 0.0
    %140 = vmatpush1.msra.mxu0 0.0
    %141 = vmatprep.subr.mxu0 0.0
    %142 = vmatpush1.msra.mxu0 0.0
    %143 = vmatprep.subr.mxu0 0.0
    %144 = vmatpush1.msra.mxu0 0.0
    %145 = vmatprep.subr.mxu0 0.0
    %146 = vmatpush1.msra.mxu0 0.0
    %147 = vmatprep.subr.mxu0 0.0
    %148 = vmatpush1.msra.mxu0 0.0
    %149 = vmatprep.subr.mxu0 0.0
    %150 = vmatpush1.msra.mxu0 0.0
    %151 = vmatprep.subr.mxu0 0.0
    %152 = vmatpush1.msra.mxu0 0.0
    %153 = vmatprep.subr.mxu0 0.0
    %154 = vmatpush1.msra.mxu0 0.0
    %155 = vmatprep.subr.mxu0 0.0
    %156 = vmatpush1.msra.mxu0 0.0
    %157 = vmatprep.subr.mxu0 0.0
    %158 = vmatpush1.msra.mxu0 0.0
    %159 = vmatprep.subr.mxu0 0.0
    %160 = vmatpush1.msra.mxu0 0.0
    %161 = vmatprep.subr.mxu0 0.0
    %162 = vmatpush1.msra.mxu0 0.0
    %163 = vmatprep.subr.mxu0 0.0
    %164 = vmatpush1.msra.mxu0 0.0
    %165 = vmatprep.subr.mxu0 0.0
    %166 = vmatpush1.msra.mxu0 0.0
    %167 = vmatprep.subr.mxu0 0.0
    %168 = vmatpush1.msra.mxu0 0.0
    %169 = vmatprep.subr.mxu0 0.0
    %170 = vmatpush1.msra.mxu0 0.0
    %171 = vmatprep.subr.mxu0 0.0
    %172 = vmatpush1.msra.mxu0 0.0
    %173 = vmatprep.subr.mxu0 0.0
    %174 = vmatpush1.msra.mxu0 0.0
    %175 = vmatprep.subr.mxu0 0.0
    %176 = vmatpush1.msra.mxu0 0.0
    %177 = vmatprep.subr.mxu0 0.0
    %178 = vmatpush1.msra.mxu0 0.0
    %179 = vmatprep.subr.mxu0 0.0
    %180 = vmatpush1.msra.mxu0 0.0
    %181 = vmatprep.subr.mxu0 0.0
    %182 = vmatpush1.msra.mxu0 0.0
    %183 = vmatprep.subr.mxu0 0.0
    %184 = vmatpush1.msra.mxu0 0.0
    %185 = vmatprep.subr.mxu0 0.0
    %186 = vmatpush1.msra.mxu0 0.0
    %187 = vmatprep.subr.mxu0 0.0
    %188 = vmatpush1.msra.mxu0 0.0
    %189 = vmatprep.subr.mxu0 0.0
    %190 = vmatpush1.msra.mxu0 0.0
    %191 = vmatprep.mubr.f32.mxu0 0.0
    %192 = vmatmul.mubr.f32.gmra.mrb[0].mxu0 %v125
    %v193 = vpop.f32.mrb[0].mxu0
    %v194 = vadd.f32 %v121, %v193
    %v195 = vpop.f32.mrb[0].mxu0
    %196 = vdwg.mxu0
    %198 = vrot.lane.b32.xlu0 %v194, 96
    %v199 = vpop.permute.xlu0 %198
    %v200 = vsel %vm123, %v194, 0
    %v202 = vsel %vm123, %v199, 0
    %204 = vmatprep.subr.mxu0 0.0
    %205 = vmatpush1.xpose.msra.mxu0 %v202
    %206 = vmatprep.subr.mxu0 0.0
    %207 = vmatpush1.xpose.msra.mxu0 0.0
    %208 = vmatprep.subr.mxu0 0.0
    %209 = vmatpush1.xpose.msra.mxu0 0.0
    %210 = vmatprep.subr.mxu0 0.0
    %211 = vmatpush1.xpose.msra.mxu0 0.0
    %212 = vmatprep.subr.mxu0 0.0
    %213 = vmatpush1.xpose.msra.mxu0 0.0
    %214 = vmatprep.subr.mxu0 0.0
    %215 = vmatpush1.xpose.msra.mxu0 0.0
    %216 = vmatprep.subr.mxu0 0.0
    %217 = vmatpush1.xpose.msra.mxu0 0.0
    %218 = vmatprep.subr.mxu0 0.0
    %219 = vmatpush1.xpose.msra.mxu0 0.0
    %220 = vmatprep.subr.mxu0 0.0
    %221 = vmatpush1.xpose.msra.mxu0 0.0
    %222 = vmatprep.subr.mxu0 0.0
    %223 = vmatpush1.xpose.msra.mxu0 0.0
    %224 = vmatprep.subr.mxu0 0.0
    %225 = vmatpush1.xpose.msra.mxu0 0.0
    %226 = vmatprep.subr.mxu0 0.0
    %227 = vmatpush1.xpose.msra.mxu0 0.0
    %228 = vmatprep.subr.mxu0 0.0
    %229 = vmatpush1.xpose.msra.mxu0 0.0
    %230 = vmatprep.subr.mxu0 0.0
    %231 = vmatpush1.xpose.msra.mxu0 0.0
    %232 = vmatprep.subr.mxu0 0.0
    %233 = vmatpush1.xpose.msra.mxu0 0.0
    %234 = vmatprep.subr.mxu0 0.0
    %235 = vmatpush1.xpose.msra.mxu0 0.0
    %236 = vmatprep.subr.mxu0 0.0
    %237 = vmatpush1.xpose.msra.mxu0 0.0
    %238 = vmatprep.subr.mxu0 0.0
    %239 = vmatpush1.xpose.msra.mxu0 0.0
    %240 = vmatprep.subr.mxu0 0.0
    %241 = vmatpush1.xpose.msra.mxu0 0.0
    %242 = vmatprep.subr.mxu0 0.0
    %243 = vmatpush1.xpose.msra.mxu0 0.0
    %244 = vmatprep.subr.mxu0 0.0
    %245 = vmatpush1.xpose.msra.mxu0 0.0
    %246 = vmatprep.subr.mxu0 0.0
    %247 = vmatpush1.xpose.msra.mxu0 0.0
    %248 = vmatprep.subr.mxu0 0.0
    %249 = vmatpush1.xpose.msra.mxu0 0.0
    %250 = vmatprep.subr.mxu0 0.0
    %251 = vmatpush1.xpose.msra.mxu0 0.0
    %252 = vmatprep.subr.mxu0 0.0
    %253 = vmatpush1.xpose.msra.mxu0 0.0
    %254 = vmatprep.subr.mxu0 0.0
    %255 = vmatpush1.xpose.msra.mxu0 0.0
    %256 = vmatprep.subr.mxu0 0.0
    %257 = vmatpush1.xpose.msra.mxu0 0.0
    %258 = vmatprep.subr.mxu0 0.0
    %259 = vmatpush1.xpose.msra.mxu0 0.0
    %260 = vmatprep.subr.mxu0 0.0
    %261 = vmatpush1.xpose.msra.mxu0 0.0
    %262 = vmatprep.subr.mxu0 0.0
    %263 = vmatpush1.xpose.msra.mxu0 0.0
    %264 = vmatprep.subr.mxu0 0.0
    %265 = vmatpush1.xpose.msra.mxu0 0.0
    %266 = vmatprep.subr.mxu0 0.0
    %267 = vmatpush1.xpose.msra.mxu0 0.0
    %268 = vmatprep.mubr.f32.mxu0 0.0
    %269 = vmatmul.mubr.f32.gmra.mrb[0].mxu0 %v200
    %v270 = vpop.f32.mrb[0].mxu0
    %v271 = vadd.f32 0.0, %v270
    %v272 = vpop.f32.mrb[0].mxu0
    %273 = vdwg.mxu0
    %v274 = vmul.f32 %v271, 0.17677669
    %vm275 = vcmp.gt.f32.partialorder %v30, 0.5
    %v276 = vsel %vm275, -1e+30, %v274
    %vm277 = vcmask 64512
    %v278 = vsel %vm277, %v276, -inf
    %279 = vmax.xlane.f32.xlu0 %v278
    %v280 = vpop.xlane.xlu0 %279
    %v281 = vsub.f32 %v276, %v280
    %v282 = vmul.f32 %v281, 1.442695
    %v283 = vpow.pop %v282
    %v284 = vsel %vm277, %v283, 0.0
    %285 = vadd.xlane.f32.xlu0 %v284
    %v286 = vpop.xlane.xlu0 %285
    %v287 = vrcp.pop %v286
    %v288 = vmul.f32 %v283, %v287
    %289 = vrot.lane.b32.xlu0 %v194, 64
    %v290 = vpop.permute.xlu0 %289
    %v293 = vsel %vm277, %v288, 0
    %295 = vmatprep.subr.mxu0 0.0
    %296 = vmatpush1.msra.mxu0 %v290
    %297 = vmatprep.subr.mxu0 0.0
    %298 = vmatpush1.msra.mxu0 0.0
    %299 = vmatprep.subr.mxu0 0.0
    %300 = vmatpush1.msra.mxu0 0.0
    %301 = vmatprep.subr.mxu0 0.0
    %302 = vmatpush1.msra.mxu0 0.0
    %303 = vmatprep.subr.mxu0 0.0
    %304 = vmatpush1.msra.mxu0 0.0
    %305 = vmatprep.subr.mxu0 0.0
    %306 = vmatpush1.msra.mxu0 0.0
    %307 = vmatprep.subr.mxu0 0.0
    %308 = vmatpush1.msra.mxu0 0.0
    %309 = vmatprep.subr.mxu0 0.0
    %310 = vmatpush1.msra.mxu0 0.0
    %311 = vmatprep.subr.mxu0 0.0
    %312 = vmatpush1.msra.mxu0 0.0
    %313 = vmatprep.subr.mxu0 0.0
    %314 = vmatpush1.msra.mxu0 0.0
    %315 = vmatprep.subr.mxu0 0.0
    %316 = vmatpush1.msra.mxu0 0.0
    %317 = vmatprep.subr.mxu0 0.0
    %318 = vmatpush1.msra.mxu0 0.0
    %319 = vmatprep.subr.mxu0 0.0
    %320 = vmatpush1.msra.mxu0 0.0
    %321 = vmatprep.subr.mxu0 0.0
    %322 = vmatpush1.msra.mxu0 0.0
    %323 = vmatprep.subr.mxu0 0.0
    %324 = vmatpush1.msra.mxu0 0.0
    %325 = vmatprep.subr.mxu0 0.0
    %326 = vmatpush1.msra.mxu0 0.0
    %327 = vmatprep.subr.mxu0 0.0
    %328 = vmatpush1.msra.mxu0 0.0
    %329 = vmatprep.subr.mxu0 0.0
    %330 = vmatpush1.msra.mxu0 0.0
    %331 = vmatprep.subr.mxu0 0.0
    %332 = vmatpush1.msra.mxu0 0.0
    %333 = vmatprep.subr.mxu0 0.0
    %334 = vmatpush1.msra.mxu0 0.0
    %335 = vmatprep.subr.mxu0 0.0
    %336 = vmatpush1.msra.mxu0 0.0
    %337 = vmatprep.subr.mxu0 0.0
    %338 = vmatpush1.msra.mxu0 0.0
    %339 = vmatprep.subr.mxu0 0.0
    %340 = vmatpush1.msra.mxu0 0.0
    %341 = vmatprep.subr.mxu0 0.0
    %342 = vmatpush1.msra.mxu0 0.0
    %343 = vmatprep.subr.mxu0 0.0
    %344 = vmatpush1.msra.mxu0 0.0
    %345 = vmatprep.subr.mxu0 0.0
    %346 = vmatpush1.msra.mxu0 0.0
    %347 = vmatprep.subr.mxu0 0.0
    %348 = vmatpush1.msra.mxu0 0.0
    %349 = vmatprep.subr.mxu0 0.0
    %350 = vmatpush1.msra.mxu0 0.0
    %351 = vmatprep.subr.mxu0 0.0
    %352 = vmatpush1.msra.mxu0 0.0
    %353 = vmatprep.subr.mxu0 0.0
    %354 = vmatpush1.msra.mxu0 0.0
    %355 = vmatprep.subr.mxu0 0.0
    %356 = vmatpush1.msra.mxu0 0.0
    %357 = vmatprep.subr.mxu0 0.0
    %358 = vmatpush1.msra.mxu0 0.0
    %359 = vmatprep.mubr.f32.mxu0 0.0
    %360 = vmatmul.mubr.f32.gmra.mrb[0].mxu0 %v293
    %v361 = vpop.f32.mrb[0].mxu0
    %v362 = vadd.f32 0.0, %v361
    %v363 = vpop.f32.mrb[0].mxu0
    %364 = vdwg.mxu0
    %v365 = vld [vmem:[%s5 + $0x10] sm:$0xff]
    %v366 = vld [vmem:[%s5 + $0x18] sm:$0xff]
    %v367 = vld [vmem:[%s5 + $0x20] sm:$0xff]
    %v368 = vld [vmem:[%s5 + $0x28] sm:$0xff]
    %v369 = vlaneseq
    %v370 = vshrl.u32 %v369, 7
    %v371 = vsub.s32 1, %v370
    %v372 = vrot.slane %v27, %v371
    %v374 = vsel %vm123, %v362, 0
    %376 = vmatprep.subr.mxu0 0.0
    %377 = vmatpush1.msra.mxu0 %v365
    %378 = vmatprep.subr.mxu0 0.0
    %379 = vmatpush1.msra.mxu0 %v366
    %380 = vmatprep.subr.mxu0 0.0
    %381 = vmatpush1.msra.mxu0 %v367
    %382 = vmatprep.subr.mxu0 0.0
    %383 = vmatpush1.msra.mxu0 %v368
    %384 = vmatprep.subr.mxu0 0.0
    %385 = vmatpush1.msra.mxu0 0.0
    %386 = vmatprep.subr.mxu0 0.0
    %387 = vmatpush1.msra.mxu0 0.0
    %388 = vmatprep.subr.mxu0 0.0
    %389 = vmatpush1.msra.mxu0 0.0
    %390 = vmatprep.subr.mxu0 0.0
    %391 = vmatpush1.msra.mxu0 0.0
    %392 = vmatprep.subr.mxu0 0.0
    %393 = vmatpush1.msra.mxu0 0.0
    %394 = vmatprep.subr.mxu0 0.0
    %395 = vmatpush1.msra.mxu0 0.0
    %396 = vmatprep.subr.mxu0 0.0
    %397 = vmatpush1.msra.mxu0 0.0
    %398 = vmatprep.subr.mxu0 0.0
    %399 = vmatpush1.msra.mxu0 0.0
    %400 = vmatprep.subr.mxu0 0.0
    %401 = vmatpush1.msra.mxu0 0.0
    %402 = vmatprep.subr.mxu0 0.0
    %403 = vmatpush1.msra.mxu0 0.0
    %404 = vmatprep.subr.mxu0 0.0
    %405 = vmatpush1.msra.mxu0 0.0
    %406 = vmatprep.subr.mxu0 0.0
    %407 = vmatpush1.msra.mxu0 0.0
    %408 = vmatprep.subr.mxu0 0.0
    %409 = vmatpush1.msra.mxu0 0.0
    %410 = vmatprep.subr.mxu0 0.0
    %411 = vmatpush1.msra.mxu0 0.0
    %412 = vmatprep.subr.mxu0 0.0
    %413 = vmatpush1.msra.mxu0 0.0
    %414 = vmatprep.subr.mxu0 0.0
    %415 = vmatpush1.msra.mxu0 0.0
    %416 = vmatprep.subr.mxu0 0.0
    %417 = vmatpush1.msra.mxu0 0.0
    %418 = vmatprep.subr.mxu0 0.0
    %419 = vmatpush1.msra.mxu0 0.0
    %420 = vmatprep.subr.mxu0 0.0
    %421 = vmatpush1.msra.mxu0 0.0
    %422 = vmatprep.subr.mxu0 0.0
    %423 = vmatpush1.msra.mxu0 0.0
    %424 = vmatprep.subr.mxu0 0.0
    %425 = vmatpush1.msra.mxu0 0.0
    %426 = vmatprep.subr.mxu0 0.0
    %427 = vmatpush1.msra.mxu0 0.0
    %428 = vmatprep.subr.mxu0 0.0
    %429 = vmatpush1.msra.mxu0 0.0
    %430 = vmatprep.subr.mxu0 0.0
    %431 = vmatpush1.msra.mxu0 0.0
    %432 = vmatprep.subr.mxu0 0.0
    %433 = vmatpush1.msra.mxu0 0.0
    %434 = vmatprep.subr.mxu0 0.0
    %435 = vmatpush1.msra.mxu0 0.0
    %436 = vmatprep.subr.mxu0 0.0
    %437 = vmatpush1.msra.mxu0 0.0
    %438 = vmatprep.subr.mxu0 0.0
    %439 = vmatpush1.msra.mxu0 0.0
    %440 = vmatprep.mubr.f32.mxu0 0.0
    %441 = vmatmul.mubr.f32.gmra.mrb[0].mxu0 %v374
    %v442 = vpop.f32.mrb[0].mxu0
    %v443 = vadd.f32 %v372, %v442
    %v444 = vpop.f32.mrb[0].mxu0
    %445 = vdwg.mxu0
    %v446 = vld [vmem:[%s5 + $0x30] sm:$0xff]
    %v447 = vld [vmem:[%s5 + $0x38] sm:$0xff]
    %v448 = vld [vmem:[%s5 + $0x40] sm:$0xff]
    %v449 = vld [vmem:[%s5 + $0x48] sm:$0xff]
    %v450 = vld [vmem:[%s5 + $0x50] sm:$0xff]
    %v451 = vld [vmem:[%s5 + $0x58] sm:$0xff]
    %v452 = vld [vmem:[%s5 + $0x60] sm:$0xff]
    %v453 = vld [vmem:[%s5 + $0x68] sm:$0xff]
    %v455 = vsel %vm123, %v443, 0
    %457 = vmatprep.subr.mxu0 0.0
    %458 = vmatpush1.msra.mxu0 %v450
    %459 = vmatprep.subr.mxu0 0.0
    %460 = vmatpush1.msra.mxu0 %v451
    %461 = vmatprep.subr.mxu0 0.0
    %462 = vmatpush1.msra.mxu0 %v452
    %463 = vmatprep.subr.mxu0 0.0
    %464 = vmatpush1.msra.mxu0 %v453
    %465 = vmatprep.subr.mxu0 0.0
    %466 = vmatpush1.msra.mxu0 0.0
    %467 = vmatprep.subr.mxu0 0.0
    %468 = vmatpush1.msra.mxu0 0.0
    %469 = vmatprep.subr.mxu0 0.0
    %470 = vmatpush1.msra.mxu0 0.0
    %471 = vmatprep.subr.mxu0 0.0
    %472 = vmatpush1.msra.mxu0 0.0
    %473 = vmatprep.subr.mxu0 0.0
    %474 = vmatpush1.msra.mxu0 0.0
    %475 = vmatprep.subr.mxu0 0.0
    %476 = vmatpush1.msra.mxu0 0.0
    %477 = vmatprep.subr.mxu0 0.0
    %478 = vmatpush1.msra.mxu0 0.0
    %479 = vmatprep.subr.mxu0 0.0
    %480 = vmatpush1.msra.mxu0 0.0
    %481 = vmatprep.subr.mxu0 0.0
    %482 = vmatpush1.msra.mxu0 0.0
    %483 = vmatprep.subr.mxu0 0.0
    %484 = vmatpush1.msra.mxu0 0.0
    %485 = vmatprep.subr.mxu0 0.0
    %486 = vmatpush1.msra.mxu0 0.0
    %487 = vmatprep.subr.mxu0 0.0
    %488 = vmatpush1.msra.mxu0 0.0
    %489 = vmatprep.subr.mxu0 0.0
    %490 = vmatpush1.msra.mxu0 0.0
    %491 = vmatprep.subr.mxu0 0.0
    %492 = vmatpush1.msra.mxu0 0.0
    %493 = vmatprep.subr.mxu0 0.0
    %494 = vmatpush1.msra.mxu0 0.0
    %495 = vmatprep.subr.mxu0 0.0
    %496 = vmatpush1.msra.mxu0 0.0
    %497 = vmatprep.subr.mxu0 0.0
    %498 = vmatpush1.msra.mxu0 0.0
    %499 = vmatprep.subr.mxu0 0.0
    %500 = vmatpush1.msra.mxu0 0.0
    %501 = vmatprep.subr.mxu0 0.0
    %502 = vmatpush1.msra.mxu0 0.0
    %503 = vmatprep.subr.mxu0 0.0
    %504 = vmatpush1.msra.mxu0 0.0
    %505 = vmatprep.subr.mxu0 0.0
    %506 = vmatpush1.msra.mxu0 0.0
    %507 = vmatprep.subr.mxu0 0.0
    %508 = vmatpush1.msra.mxu0 0.0
    %509 = vmatprep.subr.mxu0 0.0
    %510 = vmatpush1.msra.mxu0 0.0
    %511 = vmatprep.subr.mxu0 0.0
    %512 = vmatpush1.msra.mxu0 0.0
    %513 = vmatprep.subr.mxu0 0.0
    %514 = vmatpush1.msra.mxu0 0.0
    %515 = vmatprep.subr.mxu0 0.0
    %516 = vmatpush1.msra.mxu0 0.0
    %517 = vmatprep.subr.mxu0 0.0
    %518 = vmatpush1.msra.mxu0 0.0
    %519 = vmatprep.subr.mxu0 0.0
    %520 = vmatpush1.msra.mxu0 0.0
    %521 = vmatprep.mubr.f32.mxu0 0.0
    %522 = vmatmul.mubr.f32.gmra.mrb[0].mxu0 %v455
    %v523 = vpop.f32.mrb[0].mxu0
    %v524 = vadd.f32 0.0, %v523
    %v525 = vpop.f32.mrb[0].mxu0
    %526 = vdwg.mxu0
    %527 = vmatprep.subr.mxu0 0.0
    %528 = vmatpush1.msra.mxu0 %v446
    %529 = vmatprep.subr.mxu0 0.0
    %530 = vmatpush1.msra.mxu0 %v447
    %531 = vmatprep.subr.mxu0 0.0
    %532 = vmatpush1.msra.mxu0 %v448
    %533 = vmatprep.subr.mxu0 0.0
    %534 = vmatpush1.msra.mxu0 %v449
    %535 = vmatprep.subr.mxu0 0.0
    %536 = vmatpush1.msra.mxu0 0.0
    %537 = vmatprep.subr.mxu0 0.0
    %538 = vmatpush1.msra.mxu0 0.0
    %539 = vmatprep.subr.mxu0 0.0
    %540 = vmatpush1.msra.mxu0 0.0
    %541 = vmatprep.subr.mxu0 0.0
    %542 = vmatpush1.msra.mxu0 0.0
    %543 = vmatprep.subr.mxu0 0.0
    %544 = vmatpush1.msra.mxu0 0.0
    %545 = vmatprep.subr.mxu0 0.0
    %546 = vmatpush1.msra.mxu0 0.0
    %547 = vmatprep.subr.mxu0 0.0
    %548 = vmatpush1.msra.mxu0 0.0
    %549 = vmatprep.subr.mxu0 0.0
    %550 = vmatpush1.msra.mxu0 0.0
    %551 = vmatprep.subr.mxu0 0.0
    %552 = vmatpush1.msra.mxu0 0.0
    %553 = vmatprep.subr.mxu0 0.0
    %554 = vmatpush1.msra.mxu0 0.0
    %555 = vmatprep.subr.mxu0 0.0
    %556 = vmatpush1.msra.mxu0 0.0
    %557 = vmatprep.subr.mxu0 0.0
    %558 = vmatpush1.msra.mxu0 0.0
    %559 = vmatprep.subr.mxu0 0.0
    %560 = vmatpush1.msra.mxu0 0.0
    %561 = vmatprep.subr.mxu0 0.0
    %562 = vmatpush1.msra.mxu0 0.0
    %563 = vmatprep.subr.mxu0 0.0
    %564 = vmatpush1.msra.mxu0 0.0
    %565 = vmatprep.subr.mxu0 0.0
    %566 = vmatpush1.msra.mxu0 0.0
    %567 = vmatprep.subr.mxu0 0.0
    %568 = vmatpush1.msra.mxu0 0.0
    %569 = vmatprep.subr.mxu0 0.0
    %570 = vmatpush1.msra.mxu0 0.0
    %571 = vmatprep.subr.mxu0 0.0
    %572 = vmatpush1.msra.mxu0 0.0
    %573 = vmatprep.subr.mxu0 0.0
    %574 = vmatpush1.msra.mxu0 0.0
    %575 = vmatprep.subr.mxu0 0.0
    %576 = vmatpush1.msra.mxu0 0.0
    %577 = vmatprep.subr.mxu0 0.0
    %578 = vmatpush1.msra.mxu0 0.0
    %579 = vmatprep.subr.mxu0 0.0
    %580 = vmatpush1.msra.mxu0 0.0
    %581 = vmatprep.subr.mxu0 0.0
    %582 = vmatpush1.msra.mxu0 0.0
    %583 = vmatprep.subr.mxu0 0.0
    %584 = vmatpush1.msra.mxu0 0.0
    %585 = vmatprep.subr.mxu0 0.0
    %586 = vmatpush1.msra.mxu0 0.0
    %587 = vmatprep.subr.mxu0 0.0
    %588 = vmatpush1.msra.mxu0 0.0
    %589 = vmatprep.subr.mxu0 0.0
    %590 = vmatpush1.msra.mxu0 0.0
    %591 = vmatprep.mubr.f32.mxu0 0.0
    %592 = vmatmul.mubr.f32.gmra.mrb[0].mxu0 %v125
    %v593 = vpop.f32.mrb[0].mxu0
    %v594 = vadd.f32 %v524, %v593
    %v595 = vpop.f32.mrb[0].mxu0
    %596 = vdwg.mxu0
    %v597 = vlaneseq
    %v598 = vshrl.u32 %v597, 7
    %v599 = vsub.s32 2, %v598
    %v600 = vrot.slane %v27, %v599
    %v601 = vadd.f32 %v594, %v600
    %v602 = vmax.f32 %v601, 0.0
    %v603 = vld [vmem:[%s5 + $0x70] sm:$0xff]
    %v604 = vld [vmem:[%s5 + $0x78] sm:$0xff]
    %v605 = vld [vmem:[%s5 + $0x80] sm:$0xff]
    %v606 = vld [vmem:[%s5 + $0x88] sm:$0xff]
    %v607 = vld [vmem:[%s5 + $0xd0] sm:$0xff]
    %v608 = vld [vmem:[%s5 + $0xd8] sm:$0xff]
    %v609 = vld [vmem:[%s5 + $0xe0] sm:$0xff]
    %v610 = vld [vmem:[%s5 + $0xe8] sm:$0xff]
    %v612 = vsel %vm123, %v29, 0
    %614 = vmatprep.subr.mxu0 0.0
    %615 = vmatpush1.msra.mxu0 %v607
    %616 = vmatprep.subr.mxu0 0.0
    %617 = vmatpush1.msra.mxu0 %v608
    %618 = vmatprep.subr.mxu0 0.0
    %619 = vmatpush1.msra.mxu0 %v609
    %620 = vmatprep.subr.mxu0 0.0
    %621 = vmatpush1.msra.mxu0 %v610
    %622 = vmatprep.subr.mxu0 0.0
    %623 = vmatpush1.msra.mxu0 0.0
    %624 = vmatprep.subr.mxu0 0.0
    %625 = vmatpush1.msra.mxu0 0.0
    %626 = vmatprep.subr.mxu0 0.0
    %627 = vmatpush1.msra.mxu0 0.0
    %628 = vmatprep.subr.mxu0 0.0
    %629 = vmatpush1.msra.mxu0 0.0
    %630 = vmatprep.subr.mxu0 0.0
    %631 = vmatpush1.msra.mxu0 0.0
    %632 = vmatprep.subr.mxu0 0.0
    %633 = vmatpush1.msra.mxu0 0.0
    %634 = vmatprep.subr.mxu0 0.0
    %635 = vmatpush1.msra.mxu0 0.0
    %636 = vmatprep.subr.mxu0 0.0
    %637 = vmatpush1.msra.mxu0 0.0
    %638 = vmatprep.subr.mxu0 0.0
    %639 = vmatpush1.msra.mxu0 0.0
    %640 = vmatprep.subr.mxu0 0.0
    %641 = vmatpush1.msra.mxu0 0.0
    %642 = vmatprep.subr.mxu0 0.0
    %643 = vmatpush1.msra.mxu0 0.0
    %644 = vmatprep.subr.mxu0 0.0
    %645 = vmatpush1.msra.mxu0 0.0
    %646 = vmatprep.subr.mxu0 0.0
    %647 = vmatpush1.msra.mxu0 0.0
    %648 = vmatprep.subr.mxu0 0.0
    %649 = vmatpush1.msra.mxu0 0.0
    %650 = vmatprep.subr.mxu0 0.0
    %651 = vmatpush1.msra.mxu0 0.0
    %652 = vmatprep.subr.mxu0 0.0
    %653 = vmatpush1.msra.mxu0 0.0
    %654 = vmatprep.subr.mxu0 0.0
    %655 = vmatpush1.msra.mxu0 0.0
    %656 = vmatprep.subr.mxu0 0.0
    %657 = vmatpush1.msra.mxu0 0.0
    %658 = vmatprep.subr.mxu0 0.0
    %659 = vmatpush1.msra.mxu0 0.0
    %660 = vmatprep.subr.mxu0 0.0
    %661 = vmatpush1.msra.mxu0 0.0
    %662 = vmatprep.subr.mxu0 0.0
    %663 = vmatpush1.msra.mxu0 0.0
    %664 = vmatprep.subr.mxu0 0.0
    %665 = vmatpush1.msra.mxu0 0.0
    %666 = vmatprep.subr.mxu0 0.0
    %667 = vmatpush1.msra.mxu0 0.0
    %668 = vmatprep.subr.mxu0 0.0
    %669 = vmatpush1.msra.mxu0 0.0
    %670 = vmatprep.subr.mxu0 0.0
    %671 = vmatpush1.msra.mxu0 0.0
    %672 = vmatprep.subr.mxu0 0.0
    %673 = vmatpush1.msra.mxu0 0.0
    %674 = vmatprep.subr.mxu0 0.0
    %675 = vmatpush1.msra.mxu0 0.0
    %676 = vmatprep.subr.mxu0 0.0
    %677 = vmatpush1.msra.mxu0 0.0
    %678 = vmatprep.mubr.f32.mxu0 0.0
    %679 = vmatmul.mubr.f32.gmra.mrb[0].mxu0 %v612
    %v680 = vpop.f32.mrb[0].mxu0
    %v681 = vadd.f32 0.0, %v680
    %v682 = vpop.f32.mrb[0].mxu0
    %683 = vdwg.mxu0
    %v685 = vsel %vm123, %v602, 0
    %687 = vmatprep.subr.mxu0 0.0
    %688 = vmatpush1.msra.mxu0 %v603
    %689 = vmatprep.subr.mxu0 0.0
    %690 = vmatpush1.msra.mxu0 %v604
    %691 = vmatprep.subr.mxu0 0.0
    %692 = vmatpush1.msra.mxu0 %v605
    %693 = vmatprep.subr.mxu0 0.0
    %694 = vmatpush1.msra.mxu0 %v606
    %695 = vmatprep.subr.mxu0 0.0
    %696 = vmatpush1.msra.mxu0 0.0
    %697 = vmatprep.subr.mxu0 0.0
    %698 = vmatpush1.msra.mxu0 0.0
    %699 = vmatprep.subr.mxu0 0.0
    %700 = vmatpush1.msra.mxu0 0.0
    %701 = vmatprep.subr.mxu0 0.0
    %702 = vmatpush1.msra.mxu0 0.0
    %703 = vmatprep.subr.mxu0 0.0
    %704 = vmatpush1.msra.mxu0 0.0
    %705 = vmatprep.subr.mxu0 0.0
    %706 = vmatpush1.msra.mxu0 0.0
    %707 = vmatprep.subr.mxu0 0.0
    %708 = vmatpush1.msra.mxu0 0.0
    %709 = vmatprep.subr.mxu0 0.0
    %710 = vmatpush1.msra.mxu0 0.0
    %711 = vmatprep.subr.mxu0 0.0
    %712 = vmatpush1.msra.mxu0 0.0
    %713 = vmatprep.subr.mxu0 0.0
    %714 = vmatpush1.msra.mxu0 0.0
    %715 = vmatprep.subr.mxu0 0.0
    %716 = vmatpush1.msra.mxu0 0.0
    %717 = vmatprep.subr.mxu0 0.0
    %718 = vmatpush1.msra.mxu0 0.0
    %719 = vmatprep.subr.mxu0 0.0
    %720 = vmatpush1.msra.mxu0 0.0
    %721 = vmatprep.subr.mxu0 0.0
    %722 = vmatpush1.msra.mxu0 0.0
    %723 = vmatprep.subr.mxu0 0.0
    %724 = vmatpush1.msra.mxu0 0.0
    %725 = vmatprep.subr.mxu0 0.0
    %726 = vmatpush1.msra.mxu0 0.0
    %727 = vmatprep.subr.mxu0 0.0
    %728 = vmatpush1.msra.mxu0 0.0
    %729 = vmatprep.subr.mxu0 0.0
    %730 = vmatpush1.msra.mxu0 0.0
    %731 = vmatprep.subr.mxu0 0.0
    %732 = vmatpush1.msra.mxu0 0.0
    %733 = vmatprep.subr.mxu0 0.0
    %734 = vmatpush1.msra.mxu0 0.0
    %735 = vmatprep.subr.mxu0 0.0
    %736 = vmatpush1.msra.mxu0 0.0
    %737 = vmatprep.subr.mxu0 0.0
    %738 = vmatpush1.msra.mxu0 0.0
    %739 = vmatprep.subr.mxu0 0.0
    %740 = vmatpush1.msra.mxu0 0.0
    %741 = vmatprep.subr.mxu0 0.0
    %742 = vmatpush1.msra.mxu0 0.0
    %743 = vmatprep.subr.mxu0 0.0
    %744 = vmatpush1.msra.mxu0 0.0
    %745 = vmatprep.subr.mxu0 0.0
    %746 = vmatpush1.msra.mxu0 0.0
    %747 = vmatprep.subr.mxu0 0.0
    %748 = vmatpush1.msra.mxu0 0.0
    %749 = vmatprep.subr.mxu0 0.0
    %750 = vmatpush1.msra.mxu0 0.0
    %751 = vmatprep.mubr.f32.mxu0 0.0
    %752 = vmatmul.mubr.f32.gmra.mrb[0].mxu0 %v685
    %v753 = vpop.f32.mrb[0].mxu0
    %v754 = vadd.f32 %v681, %v753
    %v755 = vpop.f32.mrb[0].mxu0
    %756 = vdwg.mxu0
    %v757 = vlaneseq
    %v758 = vshrl.u32 %v757, 7
    %v759 = vsub.s32 3, %v758
    %v760 = vrot.slane %v27, %v759
    %v761 = vadd.f32 %v754, %v760
    %v762 = vxor.u32 %v761, 2147483648
    %v763 = vmul.f32 %v762, 1.442695
    %v764 = vpow.pop %v763
    %v765 = vadd.f32 %v764, 1.0
    %v766 = vrcp.pop %v765
    %v767 = vmul.f32 1.0, %v766
    %v768 = vld [vmem:[%s5 + $0x90] sm:$0xff]
    %v769 = vld [vmem:[%s5 + $0x98] sm:$0xff]
    %v770 = vld [vmem:[%s5 + $0xa0] sm:$0xff]
    %v771 = vld [vmem:[%s5 + $0xa8] sm:$0xff]
    %v772 = vld [vmem:[%s5 + $0xf0] sm:$0xff]
    %v773 = vld [vmem:[%s5 + $0xf8] sm:$0xff]
    %v774 = vld [vmem:[%s5 + $0x100] sm:$0xff]
    %v775 = vld [vmem:[%s5 + $0x108] sm:$0xff]
    %776 = vmatprep.subr.mxu0 0.0
    %777 = vmatpush1.msra.mxu0 %v772
    %778 = vmatprep.subr.mxu0 0.0
    %779 = vmatpush1.msra.mxu0 %v773
    %780 = vmatprep.subr.mxu0 0.0
    %781 = vmatpush1.msra.mxu0 %v774
    %782 = vmatprep.subr.mxu0 0.0
    %783 = vmatpush1.msra.mxu0 %v775
    %784 = vmatprep.subr.mxu0 0.0
    %785 = vmatpush1.msra.mxu0 0.0
    %786 = vmatprep.subr.mxu0 0.0
    %787 = vmatpush1.msra.mxu0 0.0
    %788 = vmatprep.subr.mxu0 0.0
    %789 = vmatpush1.msra.mxu0 0.0
    %790 = vmatprep.subr.mxu0 0.0
    %791 = vmatpush1.msra.mxu0 0.0
    %792 = vmatprep.subr.mxu0 0.0
    %793 = vmatpush1.msra.mxu0 0.0
    %794 = vmatprep.subr.mxu0 0.0
    %795 = vmatpush1.msra.mxu0 0.0
    %796 = vmatprep.subr.mxu0 0.0
    %797 = vmatpush1.msra.mxu0 0.0
    %798 = vmatprep.subr.mxu0 0.0
    %799 = vmatpush1.msra.mxu0 0.0
    %800 = vmatprep.subr.mxu0 0.0
    %801 = vmatpush1.msra.mxu0 0.0
    %802 = vmatprep.subr.mxu0 0.0
    %803 = vmatpush1.msra.mxu0 0.0
    %804 = vmatprep.subr.mxu0 0.0
    %805 = vmatpush1.msra.mxu0 0.0
    %806 = vmatprep.subr.mxu0 0.0
    %807 = vmatpush1.msra.mxu0 0.0
    %808 = vmatprep.subr.mxu0 0.0
    %809 = vmatpush1.msra.mxu0 0.0
    %810 = vmatprep.subr.mxu0 0.0
    %811 = vmatpush1.msra.mxu0 0.0
    %812 = vmatprep.subr.mxu0 0.0
    %813 = vmatpush1.msra.mxu0 0.0
    %814 = vmatprep.subr.mxu0 0.0
    %815 = vmatpush1.msra.mxu0 0.0
    %816 = vmatprep.subr.mxu0 0.0
    %817 = vmatpush1.msra.mxu0 0.0
    %818 = vmatprep.subr.mxu0 0.0
    %819 = vmatpush1.msra.mxu0 0.0
    %820 = vmatprep.subr.mxu0 0.0
    %821 = vmatpush1.msra.mxu0 0.0
    %822 = vmatprep.subr.mxu0 0.0
    %823 = vmatpush1.msra.mxu0 0.0
    %824 = vmatprep.subr.mxu0 0.0
    %825 = vmatpush1.msra.mxu0 0.0
    %826 = vmatprep.subr.mxu0 0.0
    %827 = vmatpush1.msra.mxu0 0.0
    %828 = vmatprep.subr.mxu0 0.0
    %829 = vmatpush1.msra.mxu0 0.0
    %830 = vmatprep.subr.mxu0 0.0
    %831 = vmatpush1.msra.mxu0 0.0
    %832 = vmatprep.subr.mxu0 0.0
    %833 = vmatpush1.msra.mxu0 0.0
    %834 = vmatprep.subr.mxu0 0.0
    %835 = vmatpush1.msra.mxu0 0.0
    %836 = vmatprep.subr.mxu0 0.0
    %837 = vmatpush1.msra.mxu0 0.0
    %838 = vmatprep.subr.mxu0 0.0
    %839 = vmatpush1.msra.mxu0 0.0
    %840 = vmatprep.mubr.f32.mxu0 0.0
    %841 = vmatmul.mubr.f32.gmra.mrb[0].mxu0 %v612
    %v842 = vpop.f32.mrb[0].mxu0
    %v843 = vadd.f32 0.0, %v842
    %v844 = vpop.f32.mrb[0].mxu0
    %845 = vdwg.mxu0
    %846 = vmatprep.subr.mxu0 0.0
    %847 = vmatpush1.msra.mxu0 %v768
    %848 = vmatprep.subr.mxu0 0.0
    %849 = vmatpush1.msra.mxu0 %v769
    %850 = vmatprep.subr.mxu0 0.0
    %851 = vmatpush1.msra.mxu0 %v770
    %852 = vmatprep.subr.mxu0 0.0
    %853 = vmatpush1.msra.mxu0 %v771
    %854 = vmatprep.subr.mxu0 0.0
    %855 = vmatpush1.msra.mxu0 0.0
    %856 = vmatprep.subr.mxu0 0.0
    %857 = vmatpush1.msra.mxu0 0.0
    %858 = vmatprep.subr.mxu0 0.0
    %859 = vmatpush1.msra.mxu0 0.0
    %860 = vmatprep.subr.mxu0 0.0
    %861 = vmatpush1.msra.mxu0 0.0
    %862 = vmatprep.subr.mxu0 0.0
    %863 = vmatpush1.msra.mxu0 0.0
    %864 = vmatprep.subr.mxu0 0.0
    %865 = vmatpush1.msra.mxu0 0.0
    %866 = vmatprep.subr.mxu0 0.0
    %867 = vmatpush1.msra.mxu0 0.0
    %868 = vmatprep.subr.mxu0 0.0
    %869 = vmatpush1.msra.mxu0 0.0
    %870 = vmatprep.subr.mxu0 0.0
    %871 = vmatpush1.msra.mxu0 0.0
    %872 = vmatprep.subr.mxu0 0.0
    %873 = vmatpush1.msra.mxu0 0.0
    %874 = vmatprep.subr.mxu0 0.0
    %875 = vmatpush1.msra.mxu0 0.0
    %876 = vmatprep.subr.mxu0 0.0
    %877 = vmatpush1.msra.mxu0 0.0
    %878 = vmatprep.subr.mxu0 0.0
    %879 = vmatpush1.msra.mxu0 0.0
    %880 = vmatprep.subr.mxu0 0.0
    %881 = vmatpush1.msra.mxu0 0.0
    %882 = vmatprep.subr.mxu0 0.0
    %883 = vmatpush1.msra.mxu0 0.0
    %884 = vmatprep.subr.mxu0 0.0
    %885 = vmatpush1.msra.mxu0 0.0
    %886 = vmatprep.subr.mxu0 0.0
    %887 = vmatpush1.msra.mxu0 0.0
    %888 = vmatprep.subr.mxu0 0.0
    %889 = vmatpush1.msra.mxu0 0.0
    %890 = vmatprep.subr.mxu0 0.0
    %891 = vmatpush1.msra.mxu0 0.0
    %892 = vmatprep.subr.mxu0 0.0
    %893 = vmatpush1.msra.mxu0 0.0
    %894 = vmatprep.subr.mxu0 0.0
    %895 = vmatpush1.msra.mxu0 0.0
    %896 = vmatprep.subr.mxu0 0.0
    %897 = vmatpush1.msra.mxu0 0.0
    %898 = vmatprep.subr.mxu0 0.0
    %899 = vmatpush1.msra.mxu0 0.0
    %900 = vmatprep.subr.mxu0 0.0
    %901 = vmatpush1.msra.mxu0 0.0
    %902 = vmatprep.subr.mxu0 0.0
    %903 = vmatpush1.msra.mxu0 0.0
    %904 = vmatprep.subr.mxu0 0.0
    %905 = vmatpush1.msra.mxu0 0.0
    %906 = vmatprep.subr.mxu0 0.0
    %907 = vmatpush1.msra.mxu0 0.0
    %908 = vmatprep.subr.mxu0 0.0
    %909 = vmatpush1.msra.mxu0 0.0
    %910 = vmatprep.mubr.f32.mxu0 0.0
    %911 = vmatmul.mubr.f32.gmra.mrb[0].mxu0 %v685
    %v912 = vpop.f32.mrb[0].mxu0
    %v913 = vadd.f32 %v843, %v912
    %v914 = vpop.f32.mrb[0].mxu0
    %915 = vdwg.mxu0
    %v916 = vlaneseq
    %v917 = vshrl.u32 %v916, 7
    %v918 = vsub.s32 4, %v917
    %v919 = vrot.slane %v27, %v918
    %v920 = vadd.f32 %v913, %v919
    %v921 = vxor.u32 %v920, 2147483648
    %v922 = vmul.f32 %v921, 1.442695
    %v923 = vpow.pop %v922
    %v924 = vadd.f32 %v923, 1.0
    %v925 = vrcp.pop %v924
    %v926 = vmul.f32 1.0, %v925
    %v927 = vld [vmem:[%s5 + $0xb0] sm:$0xff]
    %v928 = vld [vmem:[%s5 + $0xb8] sm:$0xff]
    %v929 = vld [vmem:[%s5 + $0xc0] sm:$0xff]
    %v930 = vld [vmem:[%s5 + $0xc8] sm:$0xff]
    %v931 = vlaneseq
    %v932 = vshrl.u32 %v931, 7
    %v933 = vsub.s32 5, %v932
    %v934 = vrot.slane %v27, %v933
    %935 = vmatprep.subr.mxu0 0.0
    %936 = vmatpush1.msra.mxu0 %v927
    %937 = vmatprep.subr.mxu0 0.0
    %938 = vmatpush1.msra.mxu0 %v928
    %939 = vmatprep.subr.mxu0 0.0
    %940 = vmatpush1.msra.mxu0 %v929
    %941 = vmatprep.subr.mxu0 0.0
    %942 = vmatpush1.msra.mxu0 %v930
    %943 = vmatprep.subr.mxu0 0.0
    %944 = vmatpush1.msra.mxu0 0.0
    %945 = vmatprep.subr.mxu0 0.0
    %946 = vmatpush1.msra.mxu0 0.0
    %947 = vmatprep.subr.mxu0 0.0
    %948 = vmatpush1.msra.mxu0 0.0
    %949 = vmatprep.subr.mxu0 0.0
    %950 = vmatpush1.msra.mxu0 0.0
    %951 = vmatprep.subr.mxu0 0.0
    %952 = vmatpush1.msra.mxu0 0.0
    %953 = vmatprep.subr.mxu0 0.0
    %954 = vmatpush1.msra.mxu0 0.0
    %955 = vmatprep.subr.mxu0 0.0
    %956 = vmatpush1.msra.mxu0 0.0
    %957 = vmatprep.subr.mxu0 0.0
    %958 = vmatpush1.msra.mxu0 0.0
    %959 = vmatprep.subr.mxu0 0.0
    %960 = vmatpush1.msra.mxu0 0.0
    %961 = vmatprep.subr.mxu0 0.0
    %962 = vmatpush1.msra.mxu0 0.0
    %963 = vmatprep.subr.mxu0 0.0
    %964 = vmatpush1.msra.mxu0 0.0
    %965 = vmatprep.subr.mxu0 0.0
    %966 = vmatpush1.msra.mxu0 0.0
    %967 = vmatprep.subr.mxu0 0.0
    %968 = vmatpush1.msra.mxu0 0.0
    %969 = vmatprep.subr.mxu0 0.0
    %970 = vmatpush1.msra.mxu0 0.0
    %971 = vmatprep.subr.mxu0 0.0
    %972 = vmatpush1.msra.mxu0 0.0
    %973 = vmatprep.subr.mxu0 0.0
    %974 = vmatpush1.msra.mxu0 0.0
    %975 = vmatprep.subr.mxu0 0.0
    %976 = vmatpush1.msra.mxu0 0.0
    %977 = vmatprep.subr.mxu0 0.0
    %978 = vmatpush1.msra.mxu0 0.0
    %979 = vmatprep.subr.mxu0 0.0
    %980 = vmatpush1.msra.mxu0 0.0
    %981 = vmatprep.subr.mxu0 0.0
    %982 = vmatpush1.msra.mxu0 0.0
    %983 = vmatprep.subr.mxu0 0.0
    %984 = vmatpush1.msra.mxu0 0.0
    %985 = vmatprep.subr.mxu0 0.0
    %986 = vmatpush1.msra.mxu0 0.0
    %987 = vmatprep.subr.mxu0 0.0
    %988 = vmatpush1.msra.mxu0 0.0
    %989 = vmatprep.subr.mxu0 0.0
    %990 = vmatpush1.msra.mxu0 0.0
    %991 = vmatprep.subr.mxu0 0.0
    %992 = vmatpush1.msra.mxu0 0.0
    %993 = vmatprep.subr.mxu0 0.0
    %994 = vmatpush1.msra.mxu0 0.0
    %995 = vmatprep.subr.mxu0 0.0
    %996 = vmatpush1.msra.mxu0 0.0
    %997 = vmatprep.subr.mxu0 0.0
    %998 = vmatpush1.msra.mxu0 0.0
    %999 = vmatprep.mubr.f32.mxu0 0.0
    %1000 = vmatmul.mubr.f32.gmra.mrb[0].mxu0 %v685
    %v1001 = vpop.f32.mrb[0].mxu0
    %v1002 = vadd.f32 %v934, %v1001
    %v1003 = vpop.f32.mrb[0].mxu0
    %1004 = vdwg.mxu0
    %v1005 = vld [vmem:[%s5 + $0x110] sm:$0xff]
    %v1006 = vld [vmem:[%s5 + $0x118] sm:$0xff]
    %v1007 = vld [vmem:[%s5 + $0x120] sm:$0xff]
    %v1008 = vld [vmem:[%s5 + $0x128] sm:$0xff]
    %v1009 = vlaneseq
    %v1010 = vshrl.u32 %v1009, 7
    %v1011 = vsub.s32 6, %v1010
    %v1012 = vrot.slane %v27, %v1011
    %1013 = vmatprep.subr.mxu0 0.0
    %1014 = vmatpush1.msra.mxu0 %v1005
    %1015 = vmatprep.subr.mxu0 0.0
    %1016 = vmatpush1.msra.mxu0 %v1006
    %1017 = vmatprep.subr.mxu0 0.0
    %1018 = vmatpush1.msra.mxu0 %v1007
    %1019 = vmatprep.subr.mxu0 0.0
    %1020 = vmatpush1.msra.mxu0 %v1008
    %1021 = vmatprep.subr.mxu0 0.0
    %1022 = vmatpush1.msra.mxu0 0.0
    %1023 = vmatprep.subr.mxu0 0.0
    %1024 = vmatpush1.msra.mxu0 0.0
    %1025 = vmatprep.subr.mxu0 0.0
    %1026 = vmatpush1.msra.mxu0 0.0
    %1027 = vmatprep.subr.mxu0 0.0
    %1028 = vmatpush1.msra.mxu0 0.0
    %1029 = vmatprep.subr.mxu0 0.0
    %1030 = vmatpush1.msra.mxu0 0.0
    %1031 = vmatprep.subr.mxu0 0.0
    %1032 = vmatpush1.msra.mxu0 0.0
    %1033 = vmatprep.subr.mxu0 0.0
    %1034 = vmatpush1.msra.mxu0 0.0
    %1035 = vmatprep.subr.mxu0 0.0
    %1036 = vmatpush1.msra.mxu0 0.0
    %1037 = vmatprep.subr.mxu0 0.0
    %1038 = vmatpush1.msra.mxu0 0.0
    %1039 = vmatprep.subr.mxu0 0.0
    %1040 = vmatpush1.msra.mxu0 0.0
    %1041 = vmatprep.subr.mxu0 0.0
    %1042 = vmatpush1.msra.mxu0 0.0
    %1043 = vmatprep.subr.mxu0 0.0
    %1044 = vmatpush1.msra.mxu0 0.0
    %1045 = vmatprep.subr.mxu0 0.0
    %1046 = vmatpush1.msra.mxu0 0.0
    %1047 = vmatprep.subr.mxu0 0.0
    %1048 = vmatpush1.msra.mxu0 0.0
    %1049 = vmatprep.subr.mxu0 0.0
    %1050 = vmatpush1.msra.mxu0 0.0
    %1051 = vmatprep.subr.mxu0 0.0
    %1052 = vmatpush1.msra.mxu0 0.0
    %1053 = vmatprep.subr.mxu0 0.0
    %1054 = vmatpush1.msra.mxu0 0.0
    %1055 = vmatprep.subr.mxu0 0.0
    %1056 = vmatpush1.msra.mxu0 0.0
    %1057 = vmatprep.subr.mxu0 0.0
    %1058 = vmatpush1.msra.mxu0 0.0
    %1059 = vmatprep.subr.mxu0 0.0
    %1060 = vmatpush1.msra.mxu0 0.0
    %1061 = vmatprep.subr.mxu0 0.0
    %1062 = vmatpush1.msra.mxu0 0.0
    %1063 = vmatprep.subr.mxu0 0.0
    %1064 = vmatpush1.msra.mxu0 0.0
    %1065 = vmatprep.subr.mxu0 0.0
    %1066 = vmatpush1.msra.mxu0 0.0
    %1067 = vmatprep.subr.mxu0 0.0
    %1068 = vmatpush1.msra.mxu0 0.0
    %1069 = vmatprep.subr.mxu0 0.0
    %1070 = vmatpush1.msra.mxu0 0.0
    %1071 = vmatprep.subr.mxu0 0.0
    %1072 = vmatpush1.msra.mxu0 0.0
    %1073 = vmatprep.subr.mxu0 0.0
    %1074 = vmatpush1.msra.mxu0 0.0
    %1075 = vmatprep.subr.mxu0 0.0
    %1076 = vmatpush1.msra.mxu0 0.0
    %1077 = vmatprep.mubr.f32.mxu0 0.0
    %1078 = vmatmul.mubr.f32.gmra.mrb[0].mxu0 %v612
    %v1079 = vpop.f32.mrb[0].mxu0
    %v1080 = vadd.f32 %v1012, %v1079
    %v1081 = vpop.f32.mrb[0].mxu0
    %1082 = vdwg.mxu0
    %v1083 = vmul.f32 %v767, %v1080
    %v1084 = vadd.f32 %v1002, %v1083
    %v1085 = vtanh.pop %v1084
    %v1086 = vsub.f32 1.0, %v926
    %v1087 = vmul.f32 %v1086, %v1085
    %v1088 = vmul.f32 %v926, %v29
    %v1089 = vadd.f32 %v1087, %v1088
    %v1090 = vld [vmem:[%s5 + $0x130] sm:$0xff]
    %v1091 = vld [vmem:[%s5 + $0x138] sm:$0xff]
    %v1092 = vld [vmem:[%s5 + $0x140] sm:$0xff]
    %v1093 = vld [vmem:[%s5 + $0x148] sm:$0xff]
    %v1094 = vlaneseq
    %v1095 = vshrl.u32 %v1094, 7
    %v1096 = vsub.s32 7, %v1095
    %v1097 = vrot.slane %v27, %v1096
    %v1099 = vsel %vm123, %v1089, 0
    %1101 = vmatprep.subr.mxu0 0.0
    %1102 = vmatpush1.msra.mxu0 %v1090
    %1103 = vmatprep.subr.mxu0 0.0
    %1104 = vmatpush1.msra.mxu0 %v1091
    %1105 = vmatprep.subr.mxu0 0.0
    %1106 = vmatpush1.msra.mxu0 %v1092
    %1107 = vmatprep.subr.mxu0 0.0
    %1108 = vmatpush1.msra.mxu0 %v1093
    %1109 = vmatprep.subr.mxu0 0.0
    %1110 = vmatpush1.msra.mxu0 0.0
    %1111 = vmatprep.subr.mxu0 0.0
    %1112 = vmatpush1.msra.mxu0 0.0
    %1113 = vmatprep.subr.mxu0 0.0
    %1114 = vmatpush1.msra.mxu0 0.0
    %1115 = vmatprep.subr.mxu0 0.0
    %1116 = vmatpush1.msra.mxu0 0.0
    %1117 = vmatprep.subr.mxu0 0.0
    %1118 = vmatpush1.msra.mxu0 0.0
    %1119 = vmatprep.subr.mxu0 0.0
    %1120 = vmatpush1.msra.mxu0 0.0
    %1121 = vmatprep.subr.mxu0 0.0
    %1122 = vmatpush1.msra.mxu0 0.0
    %1123 = vmatprep.subr.mxu0 0.0
    %1124 = vmatpush1.msra.mxu0 0.0
    %1125 = vmatprep.subr.mxu0 0.0
    %1126 = vmatpush1.msra.mxu0 0.0
    %1127 = vmatprep.subr.mxu0 0.0
    %1128 = vmatpush1.msra.mxu0 0.0
    %1129 = vmatprep.subr.mxu0 0.0
    %1130 = vmatpush1.msra.mxu0 0.0
    %1131 = vmatprep.subr.mxu0 0.0
    %1132 = vmatpush1.msra.mxu0 0.0
    %1133 = vmatprep.subr.mxu0 0.0
    %1134 = vmatpush1.msra.mxu0 0.0
    %1135 = vmatprep.subr.mxu0 0.0
    %1136 = vmatpush1.msra.mxu0 0.0
    %1137 = vmatprep.subr.mxu0 0.0
    %1138 = vmatpush1.msra.mxu0 0.0
    %1139 = vmatprep.subr.mxu0 0.0
    %1140 = vmatpush1.msra.mxu0 0.0
    %1141 = vmatprep.subr.mxu0 0.0
    %1142 = vmatpush1.msra.mxu0 0.0
    %1143 = vmatprep.subr.mxu0 0.0
    %1144 = vmatpush1.msra.mxu0 0.0
    %1145 = vmatprep.subr.mxu0 0.0
    %1146 = vmatpush1.msra.mxu0 0.0
    %1147 = vmatprep.subr.mxu0 0.0
    %1148 = vmatpush1.msra.mxu0 0.0
    %1149 = vmatprep.subr.mxu0 0.0
    %1150 = vmatpush1.msra.mxu0 0.0
    %1151 = vmatprep.subr.mxu0 0.0
    %1152 = vmatpush1.msra.mxu0 0.0
    %1153 = vmatprep.subr.mxu0 0.0
    %1154 = vmatpush1.msra.mxu0 0.0
    %1155 = vmatprep.subr.mxu0 0.0
    %1156 = vmatpush1.msra.mxu0 0.0
    %1157 = vmatprep.subr.mxu0 0.0
    %1158 = vmatpush1.msra.mxu0 0.0
    %1159 = vmatprep.subr.mxu0 0.0
    %1160 = vmatpush1.msra.mxu0 0.0
    %1161 = vmatprep.subr.mxu0 0.0
    %1162 = vmatpush1.msra.mxu0 0.0
    %1163 = vmatprep.subr.mxu0 0.0
    %1164 = vmatpush1.msra.mxu0 0.0
    %1165 = vmatprep.mubr.f32.mxu0 0.0
    %1166 = vmatmul.mubr.f32.gmra.mrb[0].mxu0 %v1099
    %v1167 = vpop.f32.mrb[0].mxu0
    %v1168 = vadd.f32 %v1097, %v1167
    %v1169 = vpop.f32.mrb[0].mxu0
    %1170 = vdwg.mxu0
    %1171 = vrot.lane.b32.xlu0 %v1089, 32
    %v1172 = vpop.permute.xlu0 %1171
    %1174 = vrot.lane.b32.xlu0 %v602, 64
    %v1175 = vpop.permute.xlu0 %1174
    %v1177 = vsel %vm123, %v1168, %v1172
    %vm1178 = vcmask 523264
    %v1179 = vsel %vm1178, %v1177, %v1175
    %vm1180 = vcmask 785408
    %v1181 = vsel %vm1180, %v1179, 0.0
    %1182 = vst [vmem:[#allocation2] sm:$0xff] %v1181
    // Predicated region
    $region30: #{tpu_custom_call.1} parent=1 // pred_check
      _
    $region31: #{tpu_custom_call.1} parent=1 // pred_check_branch
      %1184 = sbr.rel (0) target = $region33
    $region32: #{tpu_custom_call.1} parent=1 // pred_region
      %s1186 = ssub.s32 128, 128
      %1187 = vsyncadd [#allocation3], %s1186
      %s1189 = sshll.u32 [#allocation2], 4
      %s1190 = int_to_ptr.vmem [resolvable:$true] %s1189
      %1192 = dma.vmem_to_hbm [thread:$0]  %s1190, 128, %s7, [#allocation3]
    $region33: #{tpu_custom_call.1} parent=1 // pred_fallthru
      _
    // Predicated region
    $region34: #{tpu_custom_call.1} parent=1 // pred_check
      _
    $region35: #{tpu_custom_call.1} parent=1 // pred_check_branch
      %1194 = sbr.rel (0) target = $region37
    $region36: #{tpu_custom_call.1} parent=1 // pred_region
      %1195 = dma.done [#allocation3], 128
    $region37: #{tpu_custom_call.1} parent=1 // pred_fallthru
      _
    %1196 = vsyncpa [#allocation3], 1

</llo_original>
